<compile_context>
chip_gen: v7x
topology: tpu7x:2x2x1
jax: 0.10.0
libtpu: 0.0.40
codegen_flags: <defaults>
</compile_context>

<pallas_src>
import functools

import numpy as np
import jax
import jax.numpy as jnp
from jax.experimental import pallas as pl
from jax.experimental.pallas import tpu as pltpu

SK = 3  # small (dynamic) kernel size, as in the PyTorch module


def _round_up(n: int, m: int) -> int:
    return ((n + m - 1) // m) * m


def _conv_attn_kernel(x_ref, w_ref, o_ref, a_ref, y_ref, *,
                      k_size, bp, wp, np_tile, lx, kbp, kbp_pad, lane_tiles):
    """One grid step: computes output lanes [n*np_tile, (n+1)*np_tile).

    x_ref : (BP, Lpad)      f32 zero-padded images, (Hp*Wp) flattened onto lanes,
                            B*pdim stacked on sublanes.
    w_ref : (KBP, KBP_pad)  bf16 fused weight; row block j / col block i holds the
                            batch-block-diagonal tap (i, j) (lk + dynamic dw folded).
    o_ref : (BP, np_tile)   f32 conv output in padded-flat coords (p = h*Wp + w).
    a_ref : (KBP_pad, Lx)   f32 scratch: K row-shifted copies of x stacked on sublanes.
    y_ref : (KBP, Lx)       f32 scratch: fused matmul result (one row block per col tap).
    """
    if lane_tiles == 1:
        base = 0                                             # fully static slices
    else:
        base = pl.multiple_of(pl.program_id(0) * np_tile, 128)

    # Zero the contraction-padding rows (their weight columns are zero, but stale
    # VMEM could hold NaNs and 0*NaN would poison the accumulation).
    if kbp_pad > kbp:
        a_ref[pl.ds(kbp, kbp_pad - kbp), :] = jnp.zeros(
            (kbp_pad - kbp, lx), a_ref.dtype)

    # (1) Row-shift stack (K copies, not K*K):  A[i*BP + r, q] = x[r, base + q + i*Wp]
    for i in range(k_size):
        a_ref[pl.ds(i * bp, bp), :] = x_ref[:, pl.ds(base + i * wp, lx)]

    # (2) One fused MXU matmul, contraction = K*BP (accumulation on the MXU):
    #     Y[j*BP + r_out, q] = sum_{i, r_in} W[(j,r_out),(i,r_in)] * A[i*BP + r_in, q]
    a_bf16 = a_ref[...].astype(jnp.bfloat16)
    y_ref[...] = jnp.dot(w_ref[...], a_bf16, preferred_element_type=jnp.float32)

    # (3) Column-tap reduction (K shifted adds):  out[r, p] = sum_j Y[j*BP + r, p + j]
    acc = y_ref[pl.ds(0, bp), pl.ds(0, np_tile)]
    for j in range(1, k_size):
        acc = acc + y_ref[pl.ds(j * bp, bp), pl.ds(j, np_tile)]
    o_ref[...] = acc.astype(o_ref.dtype)


def _build_static_weight(lk_filter, batch, pdim):
    """Batch-block-diagonal stacked weight (static, built once per lk_filter).

    W[j*BP + b*pdim + o, i*BP + b*pdim + c] = lk_filter[o, c, i, j]
    (i = kernel row tap, j = kernel column tap), zero-padded on the last dim to a
    multiple of 128 so the HBM->VMEM copy is lane-dense.
    """
    K = int(lk_filter.shape[-1])
    bp = batch * pdim
    kbp = K * bp
    kbp_pad = _round_up(kbp, 128)
    lk = jnp.asarray(lk_filter, jnp.float32)                    # (pdim, pdim, K, K)
    eye_b = jnp.eye(batch, dtype=jnp.float32)
    w = jnp.einsum('ocij,pq->jpoiqc', lk, eye_b).reshape(kbp, kbp)
    return jnp.pad(w, ((0, 0), (0, kbp_pad - kbp)))


def _dynamic_diag_indices(batch, pdim, k_size):
    """(rows, cols) where the per-sample dynamic 3x3 depthwise taps are added."""
    c0 = k_size // 2 - SK // 2            # centre offset of the 3x3 inside the KxK
    bp = batch * pdim
    bb, oo, ii, jj = np.meshgrid(np.arange(batch), np.arange(pdim),
                                 np.arange(SK), np.arange(SK), indexing='ij')
    rows = (c0 + jj) * bp + bb * pdim + oo
    cols = (c0 + ii) * bp + bb * pdim + oo
    return rows.reshape(-1), cols.reshape(-1)


def make_conv_attention_forward(lk_filter, pdim, x_shape, *, lane_tiles=1):
    """Builds a jitted forward(x, params) with all static prep hoisted out."""
    B, C, H, W = x_shape
    K = int(lk_filter.shape[-1])
    assert K >= SK and K % 2 == 1, "requires K >= 3 and odd (module uses K=13)"
    pad = K // 2
    Hp, Wp = H + 2 * pad, W + 2 * pad
    BP = B * pdim
    KBP = K * BP
    KBPc = _round_up(KBP, 128)

    # Output lanes (p = h*Wp + w in padded coords), lane-dense.
    Np = _round_up(H * Wp, 128)
    assert Np % lane_tiles == 0
    NpT = Np // lane_tiles
    assert NpT % 128 == 0
    LxT = _round_up(NpT + K - 1, 128)                    # row-shift stack width
    Lpad = _round_up(max(Hp * Wp, (Np - NpT) + (K - 1) * Wp + LxT), 128)

    # ---- static weight prep (hoisted out of the per-call path) ----
    w_static = _build_static_weight(lk_filter, B, pdim)  # (KBP, KBPc) f32
    rows, cols = _dynamic_diag_indices(B, pdim, K)       # numpy constants
    # TODO(synk): for large B, put batch on its own "parallel" grid axis with
    # per-batch (pdim*K, pdim*K) weights instead of growing the block-diagonal.

    kernel = functools.partial(
        _conv_attn_kernel, k_size=K, bp=BP, wp=Wp, np_tile=NpT, lx=LxT,
        kbp=KBP, kbp_pad=KBPc, lane_tiles=lane_tiles)

    flops = 2 * KBP * KBPc * LxT * lane_tiles
    bytes_accessed = 4 * BP * Lpad + 2 * KBP * KBPc + 4 * BP * Np

    conv_call = pl.pallas_call(
        kernel,
        out_shape=jax.ShapeDtypeStruct((BP, Np), jnp.float32),
        grid_spec=pltpu.PrefetchScalarGridSpec(
            num_scalar_prefetch=0,
            grid=(lane_tiles,),
            in_specs=[
                pl.BlockSpec((BP, Lpad), lambda n: (0, 0)),
                pl.BlockSpec((KBP, KBPc), lambda n: (0, 0)),
            ],
            out_specs=pl.BlockSpec((BP, NpT), lambda n: (0, n)),
            scratch_shapes=[
                pltpu.VMEM((KBPc, LxT), jnp.float32),    # row-shift stack A
                pltpu.VMEM((KBP, LxT), jnp.float32),     # fused matmul result Y
            ]),
        compiler_params=pltpu.CompilerParams(
            dimension_semantics=("parallel",),
            vmem_limit_bytes=32 * 1024 * 1024),
        cost_estimate=pl.CostEstimate(flops=flops, transcendentals=0,
                                      bytes_accessed=bytes_accessed),
    )

    def forward(x, params):
        xp = x[:, :pdim].astype(jnp.float32)

        # dwc_proj: AdaptiveAvgPool2d(1) -> 1x1 conv -> GELU -> 1x1 conv.
        # TODO(synk): per-sample dynamic-kernel generation is a few pdim^2 MACs
        # per image; it stays as plain-JAX glue feeding the kernel's weight.
        pooled = jnp.mean(xp, axis=(2, 3))                               # (B, pdim)
        hmid = jax.nn.gelu(pooled @ params["w1"].T + params["b1"],
                           approximate=False)                            # (B, pdim//2)
        dk = (hmid @ params["w2"].T + params["b2"]).reshape(-1)          # (B*pdim*9,)

        # Fold the dynamic 3x3 depthwise taps onto the centre of the static
        # block-diagonal weight: a single B*pdim*9-element scatter-add.
        w = w_static.at[rows, cols].add(dk).astype(jnp.bfloat16)

        # Pad + flatten the input once (no K*K im2col blowup in HBM).
        x_pad = jnp.pad(xp, ((0, 0), (0, 0), (pad, pad), (pad, pad)))
        x_flat = x_pad.reshape(BP, Hp * Wp)
        x_flat = jnp.pad(x_flat, ((0, 0), (0, Lpad - Hp * Wp)))

        y_flat = conv_call(x_flat, w)

        # Extract valid pixels: p = h*Wp + w  ->  (B, pdim, H, W).
        y = y_flat[:, :H * Wp].reshape(B, pdim, H, Wp)[:, :, :, :W].astype(x.dtype)
        return jnp.concatenate([y, x[:, pdim:]], axis=1)

    return jax.jit(forward)


def _reference(x, lk_filter, params, pdim):
    """Pure-JAX reference (same math as the PyTorch forward)."""
    B, C, H, W = x.shape
    xp = x[:, :pdim]
    pooled = jnp.mean(xp, axis=(2, 3))
    h = jax.nn.gelu(pooled @ params["w1"].T + params["b1"], approximate=False)
    dk = (h @ params["w2"].T + params["b2"]).reshape(B * pdim, 1, SK, SK)

    # per-sample depthwise conv via the 'b c h w -> 1 (b c) h w' trick
    x1_ = xp.reshape(1, B * pdim, H, W)
    dw = jax.lax.conv_general_dilated(
        x1_, dk, (1, 1), "SAME", feature_group_count=B * pdim,
        dimension_numbers=("NCHW", "OIHW", "NCHW"),
        precision=jax.lax.Precision.HIGHEST).reshape(B, pdim, H, W)

    lk = jax.lax.conv_general_dilated(
        xp, lk_filter, (1, 1), "SAME",
        dimension_numbers=("NCHW", "OIHW", "NCHW"),
        precision=jax.lax.Precision.HIGHEST)

    return jnp.concatenate([lk + dw, x[:, pdim:]], axis=1)


if __name__ == "__main__":
    pdim, B, C, H, W, K = 4, 2, 8, 16, 16, 13

    key = jax.random.PRNGKey(0)
    kx, klk, k1, k2, k3, k4 = jax.random.split(key, 6)
    x = jax.random.normal(kx, (B, C, H, W), jnp.float32)
    lk_filter = 0.05 * jax.random.normal(klk, (pdim, pdim, K, K), jnp.float32)
    params = dict(
        # dwc_proj[1]: Conv2d(pdim, pdim//2, 1)
        w1=0.5 * jax.random.normal(k1, (pdim // 2, pdim), jnp.float32),
        b1=0.1 * jax.random.normal(k2, (pdim // 2,), jnp.float32),
        # dwc_proj[3]: Conv2d(pdim//2, pdim*3*3, 1). The PyTorch module zero-inits
        # this layer; we use small non-zero values so the dynamic path is exercised.
        w2=0.1 * jax.random.normal(k3, (pdim * SK * SK, pdim // 2), jnp.float32),
        b2=0.1 * jax.random.normal(k4, (pdim * SK * SK,), jnp.float32),
    )

    # lane_tiles=1 for v5e/v6e (single TensorCore per chip); set lane_tiles=2 on
    # v7x to split the output lane axis across both TensorCores.
    fwd = make_conv_attention_forward(lk_filter, pdim, x.shape, lane_tiles=1)
    out = fwd(x, params)
    jax.block_until_ready(out)

    ref = _reference(x, lk_filter, params, pdim)
    assert out.shape == x.shape and out.dtype == x.dtype
    max_err = float(jnp.max(jnp.abs(out - ref)))
    assert jnp.allclose(out, ref, atol=2e-2, rtol=2e-2), f"max abs err {max_err}"
    print("KERNEL_OK")
</pallas_src>

<mosaic_0001>
module attributes {stable_mosaic.version = 11 : i64} {
  func.func @_conv_attn_kernel(%arg0: i32, %arg1: memref<8x1024xf32, #tpu.memory_space<vmem>>, %arg2: memref<104x128xbf16, #tpu.memory_space<vmem>>, %arg3: memref<8x512xf32, #tpu.memory_space<vmem>>, %arg4: memref<128x640xf32, #tpu.memory_space<vmem>>, %arg5: memref<104x640xf32, #tpu.memory_space<vmem>>) attributes {dimension_semantics = [#tpu.dimension_semantics<parallel>], iteration_bounds = array<i64: 1>, scalar_prefetch = 0 : i64, scratch_operands = 2 : i64, tpu.core_type = #tpu.core_type<tc>, window_params = [{pipeline_mode = #tpu.pipeline_mode<synchronous>, transform_indices = @transform_0, window_bounds = array<i64: 8, 1024>}, {pipeline_mode = #tpu.pipeline_mode<synchronous>, transform_indices = @transform_1, window_bounds = array<i64: 104, 128>}, {transform_indices = @transform_2, window_bounds = array<i64: 8, 512>}]} {
    %cst = arith.constant 0.000000e+00 : f32
    %0 = vector.broadcast %cst : f32 to vector<24x640xf32>
    %c104 = arith.constant 104 : index
    %c0 = arith.constant 0 : index
    %1 = vector.load %arg4[%c104, %c0] : memref<128x640xf32, #tpu.memory_space<vmem>>, vector<24x640xf32>
    tpu.vector_store %arg4[%c104, %c0], %0 {strides = array<i32>} : memref<128x640xf32, #tpu.memory_space<vmem>>, vector<24x640xf32>,
    %c0_0 = arith.constant 0 : index
    %c0_1 = arith.constant 0 : index
    %2 = vector.load %arg1[%c0_0, %c0_1] : memref<8x1024xf32, #tpu.memory_space<vmem>>, vector<8x640xf32>
    %c0_2 = arith.constant 0 : index
    %c0_3 = arith.constant 0 : index
    %3 = vector.load %arg4[%c0_2, %c0_3] : memref<128x640xf32, #tpu.memory_space<vmem>>, vector<8x640xf32>
    tpu.vector_store %arg4[%c0_2, %c0_3], %2 {strides = array<i32>} : memref<128x640xf32, #tpu.memory_space<vmem>>, vector<8x640xf32>,
    %c0_4 = arith.constant 0 : index
    %c28 = arith.constant 28 : index
    %4 = vector.load %arg1[%c0_4, %c28] : memref<8x1024xf32, #tpu.memory_space<vmem>>, vector<8x640xf32>
    %c8 = arith.constant 8 : index
    %c0_5 = arith.constant 0 : index
    %5 = vector.load %arg4[%c8, %c0_5] : memref<128x640xf32, #tpu.memory_space<vmem>>, vector<8x640xf32>
    tpu.vector_store %arg4[%c8, %c0_5], %4 {strides = array<i32>} : memref<128x640xf32, #tpu.memory_space<vmem>>, vector<8x640xf32>,
    %c0_6 = arith.constant 0 : index
    %c56 = arith.constant 56 : index
    %6 = vector.load %arg1[%c0_6, %c56] : memref<8x1024xf32, #tpu.memory_space<vmem>>, vector<8x640xf32>
    %c16 = arith.constant 16 : index
    %c0_7 = arith.constant 0 : index
    %7 = vector.load %arg4[%c16, %c0_7] : memref<128x640xf32, #tpu.memory_space<vmem>>, vector<8x640xf32>
    tpu.vector_store %arg4[%c16, %c0_7], %6 {strides = array<i32>} : memref<128x640xf32, #tpu.memory_space<vmem>>, vector<8x640xf32>,
    %c0_8 = arith.constant 0 : index
    %c84 = arith.constant 84 : index
    %8 = vector.load %arg1[%c0_8, %c84] : memref<8x1024xf32, #tpu.memory_space<vmem>>, vector<8x640xf32>
    %c24 = arith.constant 24 : index
    %c0_9 = arith.constant 0 : index
    %9 = vector.load %arg4[%c24, %c0_9] : memref<128x640xf32, #tpu.memory_space<vmem>>, vector<8x640xf32>
    tpu.vector_store %arg4[%c24, %c0_9], %8 {strides = array<i32>} : memref<128x640xf32, #tpu.memory_space<vmem>>, vector<8x640xf32>,
    %c0_10 = arith.constant 0 : index
    %c112 = arith.constant 112 : index
    %10 = vector.load %arg1[%c0_10, %c112] : memref<8x1024xf32, #tpu.memory_space<vmem>>, vector<8x640xf32>
    %c32 = arith.constant 32 : index
    %c0_11 = arith.constant 0 : index
    %11 = vector.load %arg4[%c32, %c0_11] : memref<128x640xf32, #tpu.memory_space<vmem>>, vector<8x640xf32>
    tpu.vector_store %arg4[%c32, %c0_11], %10 {strides = array<i32>} : memref<128x640xf32, #tpu.memory_space<vmem>>, vector<8x640xf32>,
    %c0_12 = arith.constant 0 : index
    %c140 = arith.constant 140 : index
    %12 = vector.load %arg1[%c0_12, %c140] : memref<8x1024xf32, #tpu.memory_space<vmem>>, vector<8x640xf32>
    %c40 = arith.constant 40 : index
    %c0_13 = arith.constant 0 : index
    %13 = vector.load %arg4[%c40, %c0_13] : memref<128x640xf32, #tpu.memory_space<vmem>>, vector<8x640xf32>
    tpu.vector_store %arg4[%c40, %c0_13], %12 {strides = array<i32>} : memref<128x640xf32, #tpu.memory_space<vmem>>, vector<8x640xf32>,
    %c0_14 = arith.constant 0 : index
    %c168 = arith.constant 168 : index
    %14 = vector.load %arg1[%c0_14, %c168] : memref<8x1024xf32, #tpu.memory_space<vmem>>, vector<8x640xf32>
    %c48 = arith.constant 48 : index
    %c0_15 = arith.constant 0 : index
    %15 = vector.load %arg4[%c48, %c0_15] : memref<128x640xf32, #tpu.memory_space<vmem>>, vector<8x640xf32>
    tpu.vector_store %arg4[%c48, %c0_15], %14 {strides = array<i32>} : memref<128x640xf32, #tpu.memory_space<vmem>>, vector<8x640xf32>,
    %c0_16 = arith.constant 0 : index
    %c196 = arith.constant 196 : index
    %16 = vector.load %arg1[%c0_16, %c196] : memref<8x1024xf32, #tpu.memory_space<vmem>>, vector<8x640xf32>
    %c56_17 = arith.constant 56 : index
    %c0_18 = arith.constant 0 : index
    %17 = vector.load %arg4[%c56_17, %c0_18] : memref<128x640xf32, #tpu.memory_space<vmem>>, vector<8x640xf32>
    tpu.vector_store %arg4[%c56_17, %c0_18], %16 {strides = array<i32>} : memref<128x640xf32, #tpu.memory_space<vmem>>, vector<8x640xf32>,
    %c0_19 = arith.constant 0 : index
    %c224 = arith.constant 224 : index
    %18 = vector.load %arg1[%c0_19, %c224] : memref<8x1024xf32, #tpu.memory_space<vmem>>, vector<8x640xf32>
    %c64 = arith.constant 64 : index
    %c0_20 = arith.constant 0 : index
    %19 = vector.load %arg4[%c64, %c0_20] : memref<128x640xf32, #tpu.memory_space<vmem>>, vector<8x640xf32>
    tpu.vector_store %arg4[%c64, %c0_20], %18 {strides = array<i32>} : memref<128x640xf32, #tpu.memory_space<vmem>>, vector<8x640xf32>,
    %c0_21 = arith.constant 0 : index
    %c252 = arith.constant 252 : index
    %20 = vector.load %arg1[%c0_21, %c252] : memref<8x1024xf32, #tpu.memory_space<vmem>>, vector<8x640xf32>
    %c72 = arith.constant 72 : index
    %c0_22 = arith.constant 0 : index
    %21 = vector.load %arg4[%c72, %c0_22] : memref<128x640xf32, #tpu.memory_space<vmem>>, vector<8x640xf32>
    tpu.vector_store %arg4[%c72, %c0_22], %20 {strides = array<i32>} : memref<128x640xf32, #tpu.memory_space<vmem>>, vector<8x640xf32>,
    %c0_23 = arith.constant 0 : index
    %c280 = arith.constant 280 : index
    %22 = vector.load %arg1[%c0_23, %c280] : memref<8x1024xf32, #tpu.memory_space<vmem>>, vector<8x640xf32>
    %c80 = arith.constant 80 : index
    %c0_24 = arith.constant 0 : index
    %23 = vector.load %arg4[%c80, %c0_24] : memref<128x640xf32, #tpu.memory_space<vmem>>, vector<8x640xf32>
    tpu.vector_store %arg4[%c80, %c0_24], %22 {strides = array<i32>} : memref<128x640xf32, #tpu.memory_space<vmem>>, vector<8x640xf32>,
    %c0_25 = arith.constant 0 : index
    %c308 = arith.constant 308 : index
    %24 = vector.load %arg1[%c0_25, %c308] : memref<8x1024xf32, #tpu.memory_space<vmem>>, vector<8x640xf32>
    %c88 = arith.constant 88 : index
    %c0_26 = arith.constant 0 : index
    %25 = vector.load %arg4[%c88, %c0_26] : memref<128x640xf32, #tpu.memory_space<vmem>>, vector<8x640xf32>
    tpu.vector_store %arg4[%c88, %c0_26], %24 {strides = array<i32>} : memref<128x640xf32, #tpu.memory_space<vmem>>, vector<8x640xf32>,
    %c0_27 = arith.constant 0 : index
    %c336 = arith.constant 336 : index
    %26 = vector.load %arg1[%c0_27, %c336] : memref<8x1024xf32, #tpu.memory_space<vmem>>, vector<8x640xf32>
    %c96 = arith.constant 96 : index
    %c0_28 = arith.constant 0 : index
    %27 = vector.load %arg4[%c96, %c0_28] : memref<128x640xf32, #tpu.memory_space<vmem>>, vector<8x640xf32>
    tpu.vector_store %arg4[%c96, %c0_28], %26 {strides = array<i32>} : memref<128x640xf32, #tpu.memory_space<vmem>>, vector<8x640xf32>,
    %c0_29 = arith.constant 0 : index
    %c0_30 = arith.constant 0 : index
    %28 = vector.load %arg4[%c0_29, %c0_30] : memref<128x640xf32, #tpu.memory_space<vmem>>, vector<128x640xf32>
    %29 = arith.truncf %28 : vector<128x640xf32> to vector<128x640xbf16>
    %c0_31 = arith.constant 0 : index
    %c0_32 = arith.constant 0 : index
    %30 = vector.load %arg2[%c0_31, %c0_32] : memref<104x128xbf16, #tpu.memory_space<vmem>>, vector<104x128xbf16>
    %cst_33 = arith.constant dense<0.000000e+00> : vector<104x640xf32>
    %31 = tpu.matmul %30, %29, %cst_33 {dimension_numbers = #tpu.dot_dimension_numbers<[1], [0], [0], [1], [0, 0, 1, 1], [], []>} : vector<104x128xbf16>, vector<128x640xbf16>, vector<104x640xf32> -> vector<104x640xf32>
    %c0_34 = arith.constant 0 : index
    %c0_35 = arith.constant 0 : index
    %32 = vector.load %arg5[%c0_34, %c0_35] : memref<104x640xf32, #tpu.memory_space<vmem>>, vector<104x640xf32>
    tpu.vector_store %arg5[%c0_34, %c0_35], %31 {strides = array<i32>} : memref<104x640xf32, #tpu.memory_space<vmem>>, vector<104x640xf32>,
    %c0_36 = arith.constant 0 : index
    %c0_37 = arith.constant 0 : index
    %33 = vector.load %arg5[%c0_36, %c0_37] : memref<104x640xf32, #tpu.memory_space<vmem>>, vector<8x512xf32>
    %c8_38 = arith.constant 8 : index
    %c1 = arith.constant 1 : index
    %34 = vector.load %arg5[%c8_38, %c1] : memref<104x640xf32, #tpu.memory_space<vmem>>, vector<8x512xf32>
    %35 = arith.addf %33, %34 : vector<8x512xf32>
    %c16_39 = arith.constant 16 : index
    %c2 = arith.constant 2 : index
    %36 = vector.load %arg5[%c16_39, %c2] : memref<104x640xf32, #tpu.memory_space<vmem>>, vector<8x512xf32>
    %37 = arith.addf %35, %36 : vector<8x512xf32>
    %c24_40 = arith.constant 24 : index
    %c3 = arith.constant 3 : index
    %38 = vector.load %arg5[%c24_40, %c3] : memref<104x640xf32, #tpu.memory_space<vmem>>, vector<8x512xf32>
    %39 = arith.addf %37, %38 : vector<8x512xf32>
    %c32_41 = arith.constant 32 : index
    %c4 = arith.constant 4 : index
    %40 = vector.load %arg5[%c32_41, %c4] : memref<104x640xf32, #tpu.memory_space<vmem>>, vector<8x512xf32>
    %41 = arith.addf %39, %40 : vector<8x512xf32>
    %c40_42 = arith.constant 40 : index
    %c5 = arith.constant 5 : index
    %42 = vector.load %arg5[%c40_42, %c5] : memref<104x640xf32, #tpu.memory_space<vmem>>, vector<8x512xf32>
    %43 = arith.addf %41, %42 : vector<8x512xf32>
    %c48_43 = arith.constant 48 : index
    %c6 = arith.constant 6 : index
    %44 = vector.load %arg5[%c48_43, %c6] : memref<104x640xf32, #tpu.memory_space<vmem>>, vector<8x512xf32>
    %45 = arith.addf %43, %44 : vector<8x512xf32>
    %c56_44 = arith.constant 56 : index
    %c7 = arith.constant 7 : index
    %46 = vector.load %arg5[%c56_44, %c7] : memref<104x640xf32, #tpu.memory_space<vmem>>, vector<8x512xf32>
    %47 = arith.addf %45, %46 : vector<8x512xf32>
    %c64_45 = arith.constant 64 : index
    %c8_46 = arith.constant 8 : index
    %48 = vector.load %arg5[%c64_45, %c8_46] : memref<104x640xf32, #tpu.memory_space<vmem>>, vector<8x512xf32>
    %49 = arith.addf %47, %48 : vector<8x512xf32>
    %c72_47 = arith.constant 72 : index
    %c9 = arith.constant 9 : index
    %50 = vector.load %arg5[%c72_47, %c9] : memref<104x640xf32, #tpu.memory_space<vmem>>, vector<8x512xf32>
    %51 = arith.addf %49, %50 : vector<8x512xf32>
    %c80_48 = arith.constant 80 : index
    %c10 = arith.constant 10 : index
    %52 = vector.load %arg5[%c80_48, %c10] : memref<104x640xf32, #tpu.memory_space<vmem>>, vector<8x512xf32>
    %53 = arith.addf %51, %52 : vector<8x512xf32>
    %c88_49 = arith.constant 88 : index
    %c11 = arith.constant 11 : index
    %54 = vector.load %arg5[%c88_49, %c11] : memref<104x640xf32, #tpu.memory_space<vmem>>, vector<8x512xf32>
    %55 = arith.addf %53, %54 : vector<8x512xf32>
    %c96_50 = arith.constant 96 : index
    %c12 = arith.constant 12 : index
    %56 = vector.load %arg5[%c96_50, %c12] : memref<104x640xf32, #tpu.memory_space<vmem>>, vector<8x512xf32>
    %57 = arith.addf %55, %56 : vector<8x512xf32>
    %c0_51 = arith.constant 0 : index
    %c0_52 = arith.constant 0 : index
    %58 = vector.load %arg3[%c0_51, %c0_52] : memref<8x512xf32, #tpu.memory_space<vmem>>, vector<8x512xf32>
    tpu.vector_store %arg3[%c0_51, %c0_52], %57 {strides = array<i32>} : memref<8x512xf32, #tpu.memory_space<vmem>>, vector<8x512xf32>,
    return
  }
  func.func @transform_0(%arg0: i32) -> (i32, i32) {
    %c0_i32 = arith.constant 0 : i32
    %c0_i32_0 = arith.constant 0 : i32
    %c0_i32_1 = arith.constant 0 : i32
    return %c0_i32, %c0_i32_0 : i32, i32
  }
  func.func @transform_1(%arg0: i32) -> (i32, i32) {
    %c0_i32 = arith.constant 0 : i32
    %c0_i32_0 = arith.constant 0 : i32
    %c0_i32_1 = arith.constant 0 : i32
    return %c0_i32, %c0_i32_0 : i32, i32
  }
  func.func @transform_2(%arg0: i32) -> (i32, i32) {
    %c0_i32 = arith.constant 0 : i32
    %c0_i32_0 = arith.constant 0 : i32
    return %c0_i32, %arg0 : i32, i32
  }
}

</mosaic_0001>

<llo_original>
// kernel: forward.1
$region0: #{forward.1}
  #allocation0 [shape = 'u32[]', space=smem, size = 0x4, offset = 0x4, fixed_abs, tag = 'smem constant byte address 0x4 - core index']
  #allocation1 [shape = 'u32[144,128]{1,0:T(1,128)}', space=vmem, size = 0x12000, scoped, tag = 'internal scratch']
  #allocation2 [shape = 'f32[128,640]{1,0:T(8,128)}', space=vmem, size = 0x50000, scoped, tag = 'scratch operand']
  #allocation3 [shape = 'f32[104,640]{1,0:T(8,128)}', space=vmem, size = 0x41000, scoped, tag = 'scratch operand']
  %s0 = inlined_call_operand.vmem [shape: f32[8,1024], index: 0, kind: input, shape index: {}]
  %s1 = inlined_call_operand.vmem [shape: bf16[104,128], index: 1, kind: input, shape index: {}]
  %s2 = inlined_call_operand.vmem [shape: f32[8,512], index: 2, kind: output, shape index: {}]
  %s3 = sld [smem:[#allocation0]]
  $region18: #{forward.1} parent=0
    _
  %s5 = ssub.s32 1, %s3
  %s6 = scalar_select 0, %s5, %s3
  // Predicated region
  $region2: #{forward.1} parent=0 // pred_check
    _
  $region3: #{forward.1} parent=0 // pred_check_branch
    %8 = sbr.rel (0) target = $region5
  $region4: #{forward.1} parent=0 // pred_region
    _
  $region5: #{forward.1} parent=0 // pred_fallthru
    _
  // Predicated region
  $region6: #{forward.1} parent=0 // pred_check
    _
  $region7: #{forward.1} parent=0 // pred_check_branch
    %10 = sbr.rel (0) target = $region9
  $region8: #{forward.1} parent=0 // pred_region
    _
  $region9: #{forward.1} parent=0 // pred_fallthru
    _
  %12 = vst [vmem:[#allocation2 + $0x208] sm:$0xff] 0.0
  %13 = vst [vmem:[#allocation2 + $0x210] sm:$0xff] 0.0
  %14 = vst [vmem:[#allocation2 + $0x218] sm:$0xff] 0.0
  %15 = vst [vmem:[#allocation2 + $0x220] sm:$0xff] 0.0
  %16 = vst [vmem:[#allocation2 + $0x228] sm:$0xff] 0.0
  %17 = vst [vmem:[#allocation2 + $0x230] sm:$0xff] 0.0
  %18 = vst [vmem:[#allocation2 + $0x238] sm:$0xff] 0.0
  %19 = vst [vmem:[#allocation2 + $0x240] sm:$0xff] 0.0
  %20 = vst [vmem:[#allocation2 + $0x248] sm:$0xff] 0.0
  %21 = vst [vmem:[#allocation2 + $0x250] sm:$0xff] 0.0
  %22 = vst [vmem:[#allocation2 + $0x258] sm:$0xff] 0.0
  %23 = vst [vmem:[#allocation2 + $0x260] sm:$0xff] 0.0
  %24 = vst [vmem:[#allocation2 + $0x268] sm:$0xff] 0.0
  %25 = vst [vmem:[#allocation2 + $0x270] sm:$0xff] 0.0
  %26 = vst [vmem:[#allocation2 + $0x278] sm:$0xff] 0.0
  %v27 = vld [vmem:[%s0] sm:$0xff]
  %v28 = vld [vmem:[%s0 + $0x8] sm:$0xff]
  %v29 = vld [vmem:[%s0 + $0x10] sm:$0xff]
  %v30 = vld [vmem:[%s0 + $0x18] sm:$0xff]
  %v31 = vld [vmem:[%s0 + $0x20] sm:$0xff]
  %32 = vst [vmem:[#allocation2] sm:$0xff] %v27
  %33 = vst [vmem:[#allocation2 + $0x8] sm:$0xff] %v28
  %34 = vst [vmem:[#allocation2 + $0x10] sm:$0xff] %v29
  %35 = vst [vmem:[#allocation2 + $0x18] sm:$0xff] %v30
  %36 = vst [vmem:[#allocation2 + $0x20] sm:$0xff] %v31
  %v37 = vld [vmem:[%s0] sm:$0xff]
  %v38 = vld [vmem:[%s0 + $0x8] sm:$0xff]
  %v39 = vld [vmem:[%s0 + $0x10] sm:$0xff]
  %v40 = vld [vmem:[%s0 + $0x18] sm:$0xff]
  %v41 = vld [vmem:[%s0 + $0x20] sm:$0xff]
  %v42 = vld [vmem:[%s0 + $0x28] sm:$0xff]
  %49 = vrot.lane.b32.xlu0 %v37, 100
  %v50 = vpop.permute.xlu0 %49
  %51 = vrot.lane.b32.xlu0 %v38, 100
  %v52 = vpop.permute.xlu0 %51
  %53 = vrot.lane.b32.xlu0 %v39, 100
  %v54 = vpop.permute.xlu0 %53
  %55 = vrot.lane.b32.xlu0 %v40, 100
  %v56 = vpop.permute.xlu0 %55
  %57 = vrot.lane.b32.xlu0 %v41, 100
  %v58 = vpop.permute.xlu0 %57
  %59 = vrot.lane.b32.xlu0 %v42, 100
  %v60 = vpop.permute.xlu0 %59
  %vm61 = vcmask 818176
  %v62 = vsel %vm61, %v50, %v52
  %v63 = vsel %vm61, %v52, %v54
  %v64 = vsel %vm61, %v54, %v56
  %v65 = vsel %vm61, %v56, %v58
  %v66 = vsel %vm61, %v58, %v60
  %72 = vst [vmem:[#allocation2 + $0x28] sm:$0xff] %v62
  %73 = vst [vmem:[#allocation2 + $0x30] sm:$0xff] %v63
  %74 = vst [vmem:[#allocation2 + $0x38] sm:$0xff] %v64
  %75 = vst [vmem:[#allocation2 + $0x40] sm:$0xff] %v65
  %76 = vst [vmem:[#allocation2 + $0x48] sm:$0xff] %v66
  %v77 = vld [vmem:[%s0] sm:$0xff]
  %v78 = vld [vmem:[%s0 + $0x8] sm:$0xff]
  %v79 = vld [vmem:[%s0 + $0x10] sm:$0xff]
  %v80 = vld [vmem:[%s0 + $0x18] sm:$0xff]
  %v81 = vld [vmem:[%s0 + $0x20] sm:$0xff]
  %v82 = vld [vmem:[%s0 + $0x28] sm:$0xff]
  %89 = vrot.lane.b32.xlu0 %v77, 72
  %v90 = vpop.permute.xlu0 %89
  %91 = vrot.lane.b32.xlu0 %v78, 72
  %v92 = vpop.permute.xlu0 %91
  %93 = vrot.lane.b32.xlu0 %v79, 72
  %v94 = vpop.permute.xlu0 %93
  %95 = vrot.lane.b32.xlu0 %v80, 72
  %v96 = vpop.permute.xlu0 %95
  %97 = vrot.lane.b32.xlu0 %v81, 72
  %v98 = vpop.permute.xlu0 %97
  %99 = vrot.lane.b32.xlu0 %v82, 72
  %v100 = vpop.permute.xlu0 %99
  %vm101 = vcmask 588800
  %v102 = vsel %vm101, %v90, %v92
  %v103 = vsel %vm101, %v92, %v94
  %v104 = vsel %vm101, %v94, %v96
  %v105 = vsel %vm101, %v96, %v98
  %v106 = vsel %vm101, %v98, %v100
  %112 = vst [vmem:[#allocation2 + $0x50] sm:$0xff] %v102
  %113 = vst [vmem:[#allocation2 + $0x58] sm:$0xff] %v103
  %114 = vst [vmem:[#allocation2 + $0x60] sm:$0xff] %v104
  %115 = vst [vmem:[#allocation2 + $0x68] sm:$0xff] %v105
  %116 = vst [vmem:[#allocation2 + $0x70] sm:$0xff] %v106
  %v117 = vld [vmem:[%s0] sm:$0xff]
  %v118 = vld [vmem:[%s0 + $0x8] sm:$0xff]
  %v119 = vld [vmem:[%s0 + $0x10] sm:$0xff]
  %v120 = vld [vmem:[%s0 + $0x18] sm:$0xff]
  %v121 = vld [vmem:[%s0 + $0x20] sm:$0xff]
  %v122 = vld [vmem:[%s0 + $0x28] sm:$0xff]
  %129 = vrot.lane.b32.xlu0 %v117, 44
  %v130 = vpop.permute.xlu0 %129
  %131 = vrot.lane.b32.xlu0 %v118, 44
  %v132 = vpop.permute.xlu0 %131
  %133 = vrot.lane.b32.xlu0 %v119, 44
  %v134 = vpop.permute.xlu0 %133
  %135 = vrot.lane.b32.xlu0 %v120, 44
  %v136 = vpop.permute.xlu0 %135
  %137 = vrot.lane.b32.xlu0 %v121, 44
  %v138 = vpop.permute.xlu0 %137
  %139 = vrot.lane.b32.xlu0 %v122, 44
  %v140 = vpop.permute.xlu0 %139
  %vm141 = vcmask 359424
  %v142 = vsel %vm141, %v130, %v132
  %v143 = vsel %vm141, %v132, %v134
  %v144 = vsel %vm141, %v134, %v136
  %v145 = vsel %vm141, %v136, %v138
  %v146 = vsel %vm141, %v138, %v140
  %152 = vst [vmem:[#allocation2 + $0x78] sm:$0xff] %v142
  %153 = vst [vmem:[#allocation2 + $0x80] sm:$0xff] %v143
  %154 = vst [vmem:[#allocation2 + $0x88] sm:$0xff] %v144
  %155 = vst [vmem:[#allocation2 + $0x90] sm:$0xff] %v145
  %156 = vst [vmem:[#allocation2 + $0x98] sm:$0xff] %v146
  %v157 = vld [vmem:[%s0] sm:$0xff]
  %v158 = vld [vmem:[%s0 + $0x8] sm:$0xff]
  %v159 = vld [vmem:[%s0 + $0x10] sm:$0xff]
  %v160 = vld [vmem:[%s0 + $0x18] sm:$0xff]
  %v161 = vld [vmem:[%s0 + $0x20] sm:$0xff]
  %v162 = vld [vmem:[%s0 + $0x28] sm:$0xff]
  %169 = vrot.lane.b32.xlu0 %v157, 16
  %v170 = vpop.permute.xlu0 %169
  %171 = vrot.lane.b32.xlu0 %v158, 16
  %v172 = vpop.permute.xlu0 %171
  %173 = vrot.lane.b32.xlu0 %v159, 16
  %v174 = vpop.permute.xlu0 %173
  %175 = vrot.lane.b32.xlu0 %v160, 16
  %v176 = vpop.permute.xlu0 %175
  %177 = vrot.lane.b32.xlu0 %v161, 16
  %v178 = vpop.permute.xlu0 %177
  %179 = vrot.lane.b32.xlu0 %v162, 16
  %v180 = vpop.permute.xlu0 %179
  %vm181 = vcmask 130048
  %v182 = vsel %vm181, %v170, %v172
  %v183 = vsel %vm181, %v172, %v174
  %v184 = vsel %vm181, %v174, %v176
  %v185 = vsel %vm181, %v176, %v178
  %v186 = vsel %vm181, %v178, %v180
  %192 = vst [vmem:[#allocation2 + $0xa0] sm:$0xff] %v182
  %193 = vst [vmem:[#allocation2 + $0xa8] sm:$0xff] %v183
  %194 = vst [vmem:[#allocation2 + $0xb0] sm:$0xff] %v184
  %195 = vst [vmem:[#allocation2 + $0xb8] sm:$0xff] %v185
  %196 = vst [vmem:[#allocation2 + $0xc0] sm:$0xff] %v186
  %v197 = vld [vmem:[%s0 + $0x8] sm:$0xff]
  %v198 = vld [vmem:[%s0 + $0x10] sm:$0xff]
  %v199 = vld [vmem:[%s0 + $0x18] sm:$0xff]
  %v200 = vld [vmem:[%s0 + $0x20] sm:$0xff]
  %v201 = vld [vmem:[%s0 + $0x28] sm:$0xff]
  %v202 = vld [vmem:[%s0 + $0x30] sm:$0xff]
  %209 = vrot.lane.b32.xlu0 %v197, 116
  %v210 = vpop.permute.xlu0 %209
  %211 = vrot.lane.b32.xlu0 %v198, 116
  %v212 = vpop.permute.xlu0 %211
  %213 = vrot.lane.b32.xlu0 %v199, 116
  %v214 = vpop.permute.xlu0 %213
  %215 = vrot.lane.b32.xlu0 %v200, 116
  %v216 = vpop.permute.xlu0 %215
  %217 = vrot.lane.b32.xlu0 %v201, 116
  %v218 = vpop.permute.xlu0 %217
  %219 = vrot.lane.b32.xlu0 %v202, 116
  %v220 = vpop.permute.xlu0 %219
  %vm221 = vcmask 949248
  %v222 = vsel %vm221, %v210, %v212
  %v223 = vsel %vm221, %v212, %v214
  %v224 = vsel %vm221, %v214, %v216
  %v225 = vsel %vm221, %v216, %v218
  %v226 = vsel %vm221, %v218, %v220
  %232 = vst [vmem:[#allocation2 + $0xc8] sm:$0xff] %v222
  %233 = vst [vmem:[#allocation2 + $0xd0] sm:$0xff] %v223
  %234 = vst [vmem:[#allocation2 + $0xd8] sm:$0xff] %v224
  %235 = vst [vmem:[#allocation2 + $0xe0] sm:$0xff] %v225
  %236 = vst [vmem:[#allocation2 + $0xe8] sm:$0xff] %v226
  %v237 = vld [vmem:[%s0 + $0x8] sm:$0xff]
  %v238 = vld [vmem:[%s0 + $0x10] sm:$0xff]
  %v239 = vld [vmem:[%s0 + $0x18] sm:$0xff]
  %v240 = vld [vmem:[%s0 + $0x20] sm:$0xff]
  %v241 = vld [vmem:[%s0 + $0x28] sm:$0xff]
  %v242 = vld [vmem:[%s0 + $0x30] sm:$0xff]
  %249 = vrot.lane.b32.xlu0 %v237, 88
  %v250 = vpop.permute.xlu0 %249
  %251 = vrot.lane.b32.xlu0 %v238, 88
  %v252 = vpop.permute.xlu0 %251
  %253 = vrot.lane.b32.xlu0 %v239, 88
  %v254 = vpop.permute.xlu0 %253
  %255 = vrot.lane.b32.xlu0 %v240, 88
  %v256 = vpop.permute.xlu0 %255
  %257 = vrot.lane.b32.xlu0 %v241, 88
  %v258 = vpop.permute.xlu0 %257
  %259 = vrot.lane.b32.xlu0 %v242, 88
  %v260 = vpop.permute.xlu0 %259
  %vm261 = vcmask 719872
  %v262 = vsel %vm261, %v250, %v252
  %v263 = vsel %vm261, %v252, %v254
  %v264 = vsel %vm261, %v254, %v256
  %v265 = vsel %vm261, %v256, %v258
  %v266 = vsel %vm261, %v258, %v260
  %272 = vst [vmem:[#allocation2 + $0xf0] sm:$0xff] %v262
  %273 = vst [vmem:[#allocation2 + $0xf8] sm:$0xff] %v263
  %274 = vst [vmem:[#allocation2 + $0x100] sm:$0xff] %v264
  %275 = vst [vmem:[#allocation2 + $0x108] sm:$0xff] %v265
  %276 = vst [vmem:[#allocation2 + $0x110] sm:$0xff] %v266
  %v277 = vld [vmem:[%s0 + $0x8] sm:$0xff]
  %v278 = vld [vmem:[%s0 + $0x10] sm:$0xff]
  %v279 = vld [vmem:[%s0 + $0x18] sm:$0xff]
  %v280 = vld [vmem:[%s0 + $0x20] sm:$0xff]
  %v281 = vld [vmem:[%s0 + $0x28] sm:$0xff]
  %v282 = vld [vmem:[%s0 + $0x30] sm:$0xff]
  %289 = vrot.lane.b32.xlu0 %v277, 60
  %v290 = vpop.permute.xlu0 %289
  %291 = vrot.lane.b32.xlu0 %v278, 60
  %v292 = vpop.permute.xlu0 %291
  %293 = vrot.lane.b32.xlu0 %v279, 60
  %v294 = vpop.permute.xlu0 %293
  %295 = vrot.lane.b32.xlu0 %v280, 60
  %v296 = vpop.permute.xlu0 %295
  %297 = vrot.lane.b32.xlu0 %v281, 60
  %v298 = vpop.permute.xlu0 %297
  %299 = vrot.lane.b32.xlu0 %v282, 60
  %v300 = vpop.permute.xlu0 %299
  %vm301 = vcmask 490496
  %v302 = vsel %vm301, %v290, %v292
  %v303 = vsel %vm301, %v292, %v294
  %v304 = vsel %vm301, %v294, %v296
  %v305 = vsel %vm301, %v296, %v298
  %v306 = vsel %vm301, %v298, %v300
  %312 = vst [vmem:[#allocation2 + $0x118] sm:$0xff] %v302
  %313 = vst [vmem:[#allocation2 + $0x120] sm:$0xff] %v303
  %314 = vst [vmem:[#allocation2 + $0x128] sm:$0xff] %v304
  %315 = vst [vmem:[#allocation2 + $0x130] sm:$0xff] %v305
  %316 = vst [vmem:[#allocation2 + $0x138] sm:$0xff] %v306
  %v317 = vld [vmem:[%s0 + $0x8] sm:$0xff]
  %v318 = vld [vmem:[%s0 + $0x10] sm:$0xff]
  %v319 = vld [vmem:[%s0 + $0x18] sm:$0xff]
  %v320 = vld [vmem:[%s0 + $0x20] sm:$0xff]
  %v321 = vld [vmem:[%s0 + $0x28] sm:$0xff]
  %v322 = vld [vmem:[%s0 + $0x30] sm:$0xff]
  %329 = vrot.lane.b32.xlu0 %v317, 32
  %v330 = vpop.permute.xlu0 %329
  %331 = vrot.lane.b32.xlu0 %v318, 32
  %v332 = vpop.permute.xlu0 %331
  %333 = vrot.lane.b32.xlu0 %v319, 32
  %v334 = vpop.permute.xlu0 %333
  %335 = vrot.lane.b32.xlu0 %v320, 32
  %v336 = vpop.permute.xlu0 %335
  %337 = vrot.lane.b32.xlu0 %v321, 32
  %v338 = vpop.permute.xlu0 %337
  %339 = vrot.lane.b32.xlu0 %v322, 32
  %v340 = vpop.permute.xlu0 %339
  %vm341 = vcmask 261120
  %v342 = vsel %vm341, %v330, %v332
  %v343 = vsel %vm341, %v332, %v334
  %v344 = vsel %vm341, %v334, %v336
  %v345 = vsel %vm341, %v336, %v338
  %v346 = vsel %vm341, %v338, %v340
  %352 = vst [vmem:[#allocation2 + $0x140] sm:$0xff] %v342
  %353 = vst [vmem:[#allocation2 + $0x148] sm:$0xff] %v343
  %354 = vst [vmem:[#allocation2 + $0x150] sm:$0xff] %v344
  %355 = vst [vmem:[#allocation2 + $0x158] sm:$0xff] %v345
  %356 = vst [vmem:[#allocation2 + $0x160] sm:$0xff] %v346
  %v357 = vld [vmem:[%s0 + $0x8] sm:$0xff]
  %v358 = vld [vmem:[%s0 + $0x10] sm:$0xff]
  %v359 = vld [vmem:[%s0 + $0x18] sm:$0xff]
  %v360 = vld [vmem:[%s0 + $0x20] sm:$0xff]
  %v361 = vld [vmem:[%s0 + $0x28] sm:$0xff]
  %v362 = vld [vmem:[%s0 + $0x30] sm:$0xff]
  %369 = vrot.lane.b32.xlu0 %v357, 4
  %v370 = vpop.permute.xlu0 %369
  %371 = vrot.lane.b32.xlu0 %v358, 4
  %v372 = vpop.permute.xlu0 %371
  %373 = vrot.lane.b32.xlu0 %v359, 4
  %v374 = vpop.permute.xlu0 %373
  %375 = vrot.lane.b32.xlu0 %v360, 4
  %v376 = vpop.permute.xlu0 %375
  %377 = vrot.lane.b32.xlu0 %v361, 4
  %v378 = vpop.permute.xlu0 %377
  %379 = vrot.lane.b32.xlu0 %v362, 4
  %v380 = vpop.permute.xlu0 %379
  %vm381 = vcmask 31744
  %v382 = vsel %vm381, %v370, %v372
  %v383 = vsel %vm381, %v372, %v374
  %v384 = vsel %vm381, %v374, %v376
  %v385 = vsel %vm381, %v376, %v378
  %v386 = vsel %vm381, %v378, %v380
  %392 = vst [vmem:[#allocation2 + $0x168] sm:$0xff] %v382
  %393 = vst [vmem:[#allocation2 + $0x170] sm:$0xff] %v383
  %394 = vst [vmem:[#allocation2 + $0x178] sm:$0xff] %v384
  %395 = vst [vmem:[#allocation2 + $0x180] sm:$0xff] %v385
  %396 = vst [vmem:[#allocation2 + $0x188] sm:$0xff] %v386
  %v397 = vld [vmem:[%s0 + $0x10] sm:$0xff]
  %v398 = vld [vmem:[%s0 + $0x18] sm:$0xff]
  %v399 = vld [vmem:[%s0 + $0x20] sm:$0xff]
  %v400 = vld [vmem:[%s0 + $0x28] sm:$0xff]
  %v401 = vld [vmem:[%s0 + $0x30] sm:$0xff]
  %v402 = vld [vmem:[%s0 + $0x38] sm:$0xff]
  %409 = vrot.lane.b32.xlu0 %v397, 104
  %v410 = vpop.permute.xlu0 %409
  %411 = vrot.lane.b32.xlu0 %v398, 104
  %v412 = vpop.permute.xlu0 %411
  %413 = vrot.lane.b32.xlu0 %v399, 104
  %v414 = vpop.permute.xlu0 %413
  %415 = vrot.lane.b32.xlu0 %v400, 104
  %v416 = vpop.permute.xlu0 %415
  %417 = vrot.lane.b32.xlu0 %v401, 104
  %v418 = vpop.permute.xlu0 %417
  %419 = vrot.lane.b32.xlu0 %v402, 104
  %v420 = vpop.permute.xlu0 %419
  %vm421 = vcmask 850944
  %v422 = vsel %vm421, %v410, %v412
  %v423 = vsel %vm421, %v412, %v414
  %v424 = vsel %vm421, %v414, %v416
  %v425 = vsel %vm421, %v416, %v418
  %v426 = vsel %vm421, %v418, %v420
  %432 = vst [vmem:[#allocation2 + $0x190] sm:$0xff] %v422
  %433 = vst [vmem:[#allocation2 + $0x198] sm:$0xff] %v423
  %434 = vst [vmem:[#allocation2 + $0x1a0] sm:$0xff] %v424
  %435 = vst [vmem:[#allocation2 + $0x1a8] sm:$0xff] %v425
  %436 = vst [vmem:[#allocation2 + $0x1b0] sm:$0xff] %v426
  %v437 = vld [vmem:[%s0 + $0x10] sm:$0xff]
  %v438 = vld [vmem:[%s0 + $0x18] sm:$0xff]
  %v439 = vld [vmem:[%s0 + $0x20] sm:$0xff]
  %v440 = vld [vmem:[%s0 + $0x28] sm:$0xff]
  %v441 = vld [vmem:[%s0 + $0x30] sm:$0xff]
  %v442 = vld [vmem:[%s0 + $0x38] sm:$0xff]
  %449 = vrot.lane.b32.xlu0 %v437, 76
  %v450 = vpop.permute.xlu0 %449
  %451 = vrot.lane.b32.xlu0 %v438, 76
  %v452 = vpop.permute.xlu0 %451
  %453 = vrot.lane.b32.xlu0 %v439, 76
  %v454 = vpop.permute.xlu0 %453
  %455 = vrot.lane.b32.xlu0 %v440, 76
  %v456 = vpop.permute.xlu0 %455
  %457 = vrot.lane.b32.xlu0 %v441, 76
  %v458 = vpop.permute.xlu0 %457
  %459 = vrot.lane.b32.xlu0 %v442, 76
  %v460 = vpop.permute.xlu0 %459
  %vm461 = vcmask 621568
  %v462 = vsel %vm461, %v450, %v452
  %v463 = vsel %vm461, %v452, %v454
  %v464 = vsel %vm461, %v454, %v456
  %v465 = vsel %vm461, %v456, %v458
  %v466 = vsel %vm461, %v458, %v460
  %472 = vst [vmem:[#allocation2 + $0x1b8] sm:$0xff] %v462
  %473 = vst [vmem:[#allocation2 + $0x1c0] sm:$0xff] %v463
  %474 = vst [vmem:[#allocation2 + $0x1c8] sm:$0xff] %v464
  %475 = vst [vmem:[#allocation2 + $0x1d0] sm:$0xff] %v465
  %476 = vst [vmem:[#allocation2 + $0x1d8] sm:$0xff] %v466
  %v477 = vld [vmem:[%s0 + $0x10] sm:$0xff]
  %v478 = vld [vmem:[%s0 + $0x18] sm:$0xff]
  %v479 = vld [vmem:[%s0 + $0x20] sm:$0xff]
  %v480 = vld [vmem:[%s0 + $0x28] sm:$0xff]
  %v481 = vld [vmem:[%s0 + $0x30] sm:$0xff]
  %v482 = vld [vmem:[%s0 + $0x38] sm:$0xff]
  %489 = vrot.lane.b32.xlu0 %v477, 48
  %v490 = vpop.permute.xlu0 %489
  %491 = vrot.lane.b32.xlu0 %v478, 48
  %v492 = vpop.permute.xlu0 %491
  %493 = vrot.lane.b32.xlu0 %v479, 48
  %v494 = vpop.permute.xlu0 %493
  %495 = vrot.lane.b32.xlu0 %v480, 48
  %v496 = vpop.permute.xlu0 %495
  %497 = vrot.lane.b32.xlu0 %v481, 48
  %v498 = vpop.permute.xlu0 %497
  %499 = vrot.lane.b32.xlu0 %v482, 48
  %v500 = vpop.permute.xlu0 %499
  %vm501 = vcmask 392192
  %v502 = vsel %vm501, %v490, %v492
  %v503 = vsel %vm501, %v492, %v494
  %v504 = vsel %vm501, %v494, %v496
  %v505 = vsel %vm501, %v496, %v498
  %v506 = vsel %vm501, %v498, %v500
  %512 = vst [vmem:[#allocation2 + $0x1e0] sm:$0xff] %v502
  %513 = vst [vmem:[#allocation2 + $0x1e8] sm:$0xff] %v503
  %514 = vst [vmem:[#allocation2 + $0x1f0] sm:$0xff] %v504
  %515 = vst [vmem:[#allocation2 + $0x1f8] sm:$0xff] %v505
  %516 = vst [vmem:[#allocation2 + $0x200] sm:$0xff] %v506
  %v517 = vld [vmem:[#allocation2] sm:$0xff]
  %v518 = vld [vmem:[#allocation2 + $0x8] sm:$0xff]
  %v519 = vld [vmem:[#allocation2 + $0x10] sm:$0xff]
  %v520 = vld [vmem:[#allocation2 + $0x18] sm:$0xff]
  %v521 = vld [vmem:[#allocation2 + $0x20] sm:$0xff]
  %v522 = vld [vmem:[#allocation2 + $0x28] sm:$0xff]
  %v523 = vld [vmem:[#allocation2 + $0x30] sm:$0xff]
  %v524 = vld [vmem:[#allocation2 + $0x38] sm:$0xff]
  %v525 = vld [vmem:[#allocation2 + $0x40] sm:$0xff]
  %v526 = vld [vmem:[#allocation2 + $0x48] sm:$0xff]
  %v527 = vld [vmem:[#allocation2 + $0x50] sm:$0xff]
  %v528 = vld [vmem:[#allocation2 + $0x58] sm:$0xff]
  %v529 = vld [vmem:[#allocation2 + $0x60] sm:$0xff]
  %v530 = vld [vmem:[#allocation2 + $0x68] sm:$0xff]
  %v531 = vld [vmem:[#allocation2 + $0x70] sm:$0xff]
  %v532 = vld [vmem:[#allocation2 + $0x78] sm:$0xff]
  %v533 = vld [vmem:[#allocation2 + $0x80] sm:$0xff]
  %v534 = vld [vmem:[#allocation2 + $0x88] sm:$0xff]
  %v535 = vld [vmem:[#allocation2 + $0x90] sm:$0xff]
  %v536 = vld [vmem:[#allocation2 + $0x98] sm:$0xff]
  %v537 = vld [vmem:[#allocation2 + $0xa0] sm:$0xff]
  %v538 = vld [vmem:[#allocation2 + $0xa8] sm:$0xff]
  %v539 = vld [vmem:[#allocation2 + $0xb0] sm:$0xff]
  %v540 = vld [vmem:[#allocation2 + $0xb8] sm:$0xff]
  %v541 = vld [vmem:[#allocation2 + $0xc0] sm:$0xff]
  %v542 = vld [vmem:[#allocation2 + $0xc8] sm:$0xff]
  %v543 = vld [vmem:[#allocation2 + $0xd0] sm:$0xff]
  %v544 = vld [vmem:[#allocation2 + $0xd8] sm:$0xff]
  %v545 = vld [vmem:[#allocation2 + $0xe0] sm:$0xff]
  %v546 = vld [vmem:[#allocation2 + $0xe8] sm:$0xff]
  %v547 = vld [vmem:[#allocation2 + $0xf0] sm:$0xff]
  %v548 = vld [vmem:[#allocation2 + $0xf8] sm:$0xff]
  %v549 = vld [vmem:[#allocation2 + $0x100] sm:$0xff]
  %v550 = vld [vmem:[#allocation2 + $0x108] sm:$0xff]
  %v551 = vld [vmem:[#allocation2 + $0x110] sm:$0xff]
  %v552 = vld [vmem:[#allocation2 + $0x118] sm:$0xff]
  %v553 = vld [vmem:[#allocation2 + $0x120] sm:$0xff]
  %v554 = vld [vmem:[#allocation2 + $0x128] sm:$0xff]
  %v555 = vld [vmem:[#allocation2 + $0x130] sm:$0xff]
  %v556 = vld [vmem:[#allocation2 + $0x138] sm:$0xff]
  %v557 = vld [vmem:[#allocation2 + $0x140] sm:$0xff]
  %v558 = vld [vmem:[#allocation2 + $0x148] sm:$0xff]
  %v559 = vld [vmem:[#allocation2 + $0x150] sm:$0xff]
  %v560 = vld [vmem:[#allocation2 + $0x158] sm:$0xff]
  %v561 = vld [vmem:[#allocation2 + $0x160] sm:$0xff]
  %v562 = vld [vmem:[#allocation2 + $0x168] sm:$0xff]
  %v563 = vld [vmem:[#allocation2 + $0x170] sm:$0xff]
  %v564 = vld [vmem:[#allocation2 + $0x178] sm:$0xff]
  %v565 = vld [vmem:[#allocation2 + $0x180] sm:$0xff]
  %v566 = vld [vmem:[#allocation2 + $0x188] sm:$0xff]
  %v567 = vld [vmem:[#allocation2 + $0x190] sm:$0xff]
  %v568 = vld [vmem:[#allocation2 + $0x198] sm:$0xff]
  %v569 = vld [vmem:[#allocation2 + $0x1a0] sm:$0xff]
  %v570 = vld [vmem:[#allocation2 + $0x1a8] sm:$0xff]
  %v571 = vld [vmem:[#allocation2 + $0x1b0] sm:$0xff]
  %v572 = vld [vmem:[#allocation2 + $0x1b8] sm:$0xff]
  %v573 = vld [vmem:[#allocation2 + $0x1c0] sm:$0xff]
  %v574 = vld [vmem:[#allocation2 + $0x1c8] sm:$0xff]
  %v575 = vld [vmem:[#allocation2 + $0x1d0] sm:$0xff]
  %v576 = vld [vmem:[#allocation2 + $0x1d8] sm:$0xff]
  %v577 = vld [vmem:[#allocation2 + $0x1e0] sm:$0xff]
  %v578 = vld [vmem:[#allocation2 + $0x1e8] sm:$0xff]
  %v579 = vld [vmem:[#allocation2 + $0x1f0] sm:$0xff]
  %v580 = vld [vmem:[#allocation2 + $0x1f8] sm:$0xff]
  %v581 = vld [vmem:[#allocation2 + $0x200] sm:$0xff]
  %v582 = vld [vmem:[#allocation2 + $0x208] sm:$0xff]
  %v583 = vld [vmem:[#allocation2 + $0x210] sm:$0xff]
  %v584 = vld [vmem:[#allocation2 + $0x218] sm:$0xff]
  %v585 = vld [vmem:[#allocation2 + $0x220] sm:$0xff]
  %v586 = vld [vmem:[#allocation2 + $0x228] sm:$0xff]
  %v587 = vld [vmem:[#allocation2 + $0x230] sm:$0xff]
  %v588 = vld [vmem:[#allocation2 + $0x238] sm:$0xff]
  %v589 = vld [vmem:[#allocation2 + $0x240] sm:$0xff]
  %v590 = vld [vmem:[#allocation2 + $0x248] sm:$0xff]
  %v591 = vld [vmem:[#allocation2 + $0x250] sm:$0xff]
  %v592 = vld [vmem:[#allocation2 + $0x258] sm:$0xff]
  %v593 = vld [vmem:[#allocation2 + $0x260] sm:$0xff]
  %v594 = vld [vmem:[#allocation2 + $0x268] sm:$0xff]
  %v595 = vld [vmem:[#allocation2 + $0x270] sm:$0xff]
  %v596 = vld [vmem:[#allocation2 + $0x278] sm:$0xff]
  %v597 = vpack.c.bf16 %v522, %v517
  %v598 = vpack.c.bf16 %v523, %v518
  %v599 = vpack.c.bf16 %v524, %v519
  %v600 = vpack.c.bf16 %v525, %v520
  %v601 = vpack.c.bf16 %v526, %v521
  %v602 = vpack.c.bf16 %v532, %v527
  %v603 = vpack.c.bf16 %v533, %v528
  %v604 = vpack.c.bf16 %v534, %v529
  %v605 = vpack.c.bf16 %v535, %v530
  %v606 = vpack.c.bf16 %v536, %v531
  %v607 = vpack.c.bf16 %v542, %v537
  %v608 = vpack.c.bf16 %v543, %v538
  %v609 = vpack.c.bf16 %v544, %v539
  %v610 = vpack.c.bf16 %v545, %v540
  %v611 = vpack.c.bf16 %v546, %v541
  %v612 = vpack.c.bf16 %v552, %v547
  %v613 = vpack.c.bf16 %v553, %v548
  %v614 = vpack.c.bf16 %v554, %v549
  %v615 = vpack.c.bf16 %v555, %v550
  %v616 = vpack.c.bf16 %v556, %v551
  %v617 = vpack.c.bf16 %v562, %v557
  %v618 = vpack.c.bf16 %v563, %v558
  %v619 = vpack.c.bf16 %v564, %v559
  %v620 = vpack.c.bf16 %v565, %v560
  %v621 = vpack.c.bf16 %v566, %v561
  %v622 = vpack.c.bf16 %v572, %v567
  %v623 = vpack.c.bf16 %v573, %v568
  %v624 = vpack.c.bf16 %v574, %v569
  %v625 = vpack.c.bf16 %v575, %v570
  %v626 = vpack.c.bf16 %v576, %v571
  %v627 = vpack.c.bf16 %v582, %v577
  %v628 = vpack.c.bf16 %v583, %v578
  %v629 = vpack.c.bf16 %v584, %v579
  %v630 = vpack.c.bf16 %v585, %v580
  %v631 = vpack.c.bf16 %v586, %v581
  %v632 = vpack.c.bf16 %v592, %v587
  %v633 = vpack.c.bf16 %v593, %v588
  %v634 = vpack.c.bf16 %v594, %v589
  %v635 = vpack.c.bf16 %v595, %v590
  %v636 = vpack.c.bf16 %v596, %v591
  %v637 = vld [vmem:[%s1] sm:$0xf]
  %v638 = vld [vmem:[%s1 + $0x4] sm:$0xf]
  %v639 = vld [vmem:[%s1 + $0x8] sm:$0xf]
  %v640 = vld [vmem:[%s1 + $0xc] sm:$0xf]
  %v641 = vld [vmem:[%s1 + $0x10] sm:$0xf]
  %v642 = vld [vmem:[%s1 + $0x14] sm:$0xf]
  %v643 = vld [vmem:[%s1 + $0x18] sm:$0xf]
  %v644 = vld [vmem:[%s1 + $0x1c] sm:$0xf]
  %v645 = vld [vmem:[%s1 + $0x20] sm:$0xf]
  %v646 = vld [vmem:[%s1 + $0x24] sm:$0xf]
  %v647 = vld [vmem:[%s1 + $0x28] sm:$0xf]
  %v648 = vld [vmem:[%s1 + $0x2c] sm:$0xf]
  %v649 = vld [vmem:[%s1 + $0x30] sm:$0xf]
  %v663 = vunpack.c.l.b16 %v637
  %v664 = vunpack.c.l.b16 %v638
  %v665 = vunpack.c.l.b16 %v639
  %v666 = vunpack.c.l.b16 %v640
  %v667 = vunpack.c.l.b16 %v641
  %v668 = vunpack.c.l.b16 %v642
  %v669 = vunpack.c.l.b16 %v643
  %v670 = vunpack.c.l.b16 %v644
  %v671 = vunpack.c.l.b16 %v645
  %v672 = vunpack.c.l.b16 %v646
  %v673 = vunpack.c.l.b16 %v647
  %v674 = vunpack.c.l.b16 %v648
  %v675 = vunpack.c.l.b16 %v649
  %v676 = vpack.c.b16 %v664, %v663
  %v677 = vpack.c.b16 %v666, %v665
  %v678 = vpack.c.b16 %v668, %v667
  %v679 = vpack.c.b16 %v670, %v669
  %v680 = vpack.c.b16 %v672, %v671
  %v681 = vpack.c.b16 %v674, %v673
  %v682 = vpack.c.b16 %v675, %v675
  %690 = vmatprep.subr.bf16.mxu0 %v598
  %691 = vmatpush1.bf16.msra.mxu0 %v597
  %692 = vmatprep.subr.bf16.mxu0 %v603
  %693 = vmatpush1.bf16.msra.mxu0 %v602
  %694 = vmatprep.subr.bf16.mxu0 %v608
  %695 = vmatpush1.bf16.msra.mxu0 %v607
  %696 = vmatprep.subr.bf16.mxu0 %v613
  %697 = vmatpush1.bf16.msra.mxu0 %v612
  %698 = vmatprep.subr.bf16.mxu0 %v618
  %699 = vmatpush1.bf16.msra.mxu0 %v617
  %700 = vmatprep.subr.bf16.mxu0 %v623
  %701 = vmatpush1.bf16.msra.mxu0 %v622
  %702 = vmatprep.subr.bf16.mxu0 %v628
  %703 = vmatpush1.bf16.msra.mxu0 %v627
  %704 = vmatprep.subr.bf16.mxu0 %v633
  %705 = vmatpush1.bf16.msra.mxu0 %v632
  %706 = vmatprep.subr.bf16.mxu0 0
  %707 = vmatpush1.bf16.msra.mxu0 0
  %708 = vmatprep.subr.bf16.mxu0 0
  %709 = vmatpush1.bf16.msra.mxu0 0
  %710 = vmatprep.subr.bf16.mxu0 0
  %711 = vmatpush1.bf16.msra.mxu0 0
  %712 = vmatprep.subr.bf16.mxu0 0
  %713 = vmatpush1.bf16.msra.mxu0 0
  %714 = vmatprep.subr.bf16.mxu0 0
  %715 = vmatpush1.bf16.msra.mxu0 0
  %716 = vmatprep.subr.bf16.mxu0 0
  %717 = vmatpush1.bf16.msra.mxu0 0
  %718 = vmatprep.subr.bf16.mxu0 0
  %719 = vmatpush1.bf16.msra.mxu0 0
  %720 = vmatprep.subr.bf16.mxu0 0
  %721 = vmatpush1.bf16.msra.mxu0 0
  %722 = vmatprep.mubr.bf16.mxu0 0
  %723 = vmatmul.mubr.bf16.gmra.mrb[0].mxu0 %v676
  %v724 = vpop.f32.mrb[0].mxu0
  %v725 = vadd.f32 0.0, %v724
  %v726 = vpop.f32.mrb[0].mxu0
  %v727 = vadd.f32 0.0, %v726
  %v728 = vpop.f32.mrb[0].mxu0
  %v729 = vadd.f32 0.0, %v728
  %v730 = vpop.f32.mrb[0].mxu0
  %v731 = vadd.f32 0.0, %v730
  %732 = vmatprep.mubr.bf16.mxu0 0
  %733 = vmatmul.mubr.bf16.gmra.mrb[0].mxu0 %v677
  %v734 = vpop.f32.mrb[0].mxu0
  %v735 = vadd.f32 0.0, %v734
  %v736 = vpop.f32.mrb[0].mxu0
  %v737 = vadd.f32 0.0, %v736
  %v738 = vpop.f32.mrb[0].mxu0
  %v739 = vadd.f32 0.0, %v738
  %v740 = vpop.f32.mrb[0].mxu0
  %v741 = vadd.f32 0.0, %v740
  %742 = vmatprep.mubr.bf16.mxu0 0
  %743 = vmatmul.mubr.bf16.gmra.mrb[0].mxu0 %v678
  %v744 = vpop.f32.mrb[0].mxu0
  %v745 = vadd.f32 0.0, %v744
  %v746 = vpop.f32.mrb[0].mxu0
  %v747 = vadd.f32 0.0, %v746
  %v748 = vpop.f32.mrb[0].mxu0
  %v749 = vadd.f32 0.0, %v748
  %v750 = vpop.f32.mrb[0].mxu0
  %v751 = vadd.f32 0.0, %v750
  %752 = vmatprep.mubr.bf16.mxu0 0
  %753 = vmatmul.mubr.bf16.gmra.mrb[0].mxu0 %v679
  %v754 = vpop.f32.mrb[0].mxu0
  %v755 = vadd.f32 0.0, %v754
  %v756 = vpop.f32.mrb[0].mxu0
  %v757 = vadd.f32 0.0, %v756
  %v758 = vpop.f32.mrb[0].mxu0
  %v759 = vadd.f32 0.0, %v758
  %v760 = vpop.f32.mrb[0].mxu0
  %v761 = vadd.f32 0.0, %v760
  %762 = vmatprep.mubr.bf16.mxu0 0
  %763 = vmatmul.mubr.bf16.gmra.mrb[0].mxu0 %v680
  %v764 = vpop.f32.mrb[0].mxu0
  %v765 = vadd.f32 0.0, %v764
  %v766 = vpop.f32.mrb[0].mxu0
  %v767 = vadd.f32 0.0, %v766
  %v768 = vpop.f32.mrb[0].mxu0
  %v769 = vadd.f32 0.0, %v768
  %v770 = vpop.f32.mrb[0].mxu0
  %v771 = vadd.f32 0.0, %v770
  %772 = vmatprep.mubr.bf16.mxu0 0
  %773 = vmatmul.mubr.bf16.gmra.mrb[0].mxu0 %v681
  %v774 = vpop.f32.mrb[0].mxu0
  %v775 = vadd.f32 0.0, %v774
  %v776 = vpop.f32.mrb[0].mxu0
  %v777 = vadd.f32 0.0, %v776
  %v778 = vpop.f32.mrb[0].mxu0
  %v779 = vadd.f32 0.0, %v778
  %v780 = vpop.f32.mrb[0].mxu0
  %v781 = vadd.f32 0.0, %v780
  %782 = vmatprep.mubr.bf16.mxu0 0
  %783 = vmatmul.mubr.bf16.gmra.mrb[0].mxu0 %v682
  %v784 = vpop.f32.mrb[0].mxu0
  %v785 = vadd.f32 0.0, %v784
  %v786 = vpop.f32.mrb[0].mxu0
  %v787 = vadd.f32 0.0, %v786
  %v788 = vpop.f32.mrb[0].mxu0
  %v789 = vpop.f32.mrb[0].mxu0
  %790 = vdwg.mxu0
  %791 = vmatprep.subr.bf16.mxu0 %v600
  %792 = vmatpush1.bf16.msra.mxu0 %v599
  %793 = vmatprep.subr.bf16.mxu0 %v605
  %794 = vmatpush1.bf16.msra.mxu0 %v604
  %795 = vmatprep.subr.bf16.mxu0 %v610
  %796 = vmatpush1.bf16.msra.mxu0 %v609
  %797 = vmatprep.subr.bf16.mxu0 %v615
  %798 = vmatpush1.bf16.msra.mxu0 %v614
  %799 = vmatprep.subr.bf16.mxu0 %v620
  %800 = vmatpush1.bf16.msra.mxu0 %v619
  %801 = vmatprep.subr.bf16.mxu0 %v625
  %802 = vmatpush1.bf16.msra.mxu0 %v624
  %803 = vmatprep.subr.bf16.mxu0 %v630
  %804 = vmatpush1.bf16.msra.mxu0 %v629
  %805 = vmatprep.subr.bf16.mxu0 %v635
  %806 = vmatpush1.bf16.msra.mxu0 %v634
  %807 = vmatprep.subr.bf16.mxu0 0
  %808 = vmatpush1.bf16.msra.mxu0 0
  %809 = vmatprep.subr.bf16.mxu0 0
  %810 = vmatpush1.bf16.msra.mxu0 0
  %811 = vmatprep.subr.bf16.mxu0 0
  %812 = vmatpush1.bf16.msra.mxu0 0
  %813 = vmatprep.subr.bf16.mxu0 0
  %814 = vmatpush1.bf16.msra.mxu0 0
  %815 = vmatprep.subr.bf16.mxu0 0
  %816 = vmatpush1.bf16.msra.mxu0 0
  %817 = vmatprep.subr.bf16.mxu0 0
  %818 = vmatpush1.bf16.msra.mxu0 0
  %819 = vmatprep.subr.bf16.mxu0 0
  %820 = vmatpush1.bf16.msra.mxu0 0
  %821 = vmatprep.subr.bf16.mxu0 0
  %822 = vmatpush1.bf16.msra.mxu0 0
  %823 = vmatprep.mubr.bf16.mxu0 0
  %824 = vmatmul.mubr.bf16.gmra.mrb[0].mxu0 %v676
  %v825 = vpop.f32.mrb[0].mxu0
  %v826 = vadd.f32 0.0, %v825
  %v827 = vpop.f32.mrb[0].mxu0
  %v828 = vadd.f32 0.0, %v827
  %v829 = vpop.f32.mrb[0].mxu0
  %v830 = vadd.f32 0.0, %v829
  %v831 = vpop.f32.mrb[0].mxu0
  %v832 = vadd.f32 0.0, %v831
  %833 = vmatprep.mubr.bf16.mxu0 0
  %834 = vmatmul.mubr.bf16.gmra.mrb[0].mxu0 %v677
  %v835 = vpop.f32.mrb[0].mxu0
  %v836 = vadd.f32 0.0, %v835
  %v837 = vpop.f32.mrb[0].mxu0
  %v838 = vadd.f32 0.0, %v837
  %v839 = vpop.f32.mrb[0].mxu0
  %v840 = vadd.f32 0.0, %v839
  %v841 = vpop.f32.mrb[0].mxu0
  %v842 = vadd.f32 0.0, %v841
  %843 = vmatprep.mubr.bf16.mxu0 0
  %844 = vmatmul.mubr.bf16.gmra.mrb[0].mxu0 %v678
  %v845 = vpop.f32.mrb[0].mxu0
  %v846 = vadd.f32 0.0, %v845
  %v847 = vpop.f32.mrb[0].mxu0
  %v848 = vadd.f32 0.0, %v847
  %v849 = vpop.f32.mrb[0].mxu0
  %v850 = vadd.f32 0.0, %v849
  %v851 = vpop.f32.mrb[0].mxu0
  %v852 = vadd.f32 0.0, %v851
  %853 = vmatprep.mubr.bf16.mxu0 0
  %854 = vmatmul.mubr.bf16.gmra.mrb[0].mxu0 %v679
  %v855 = vpop.f32.mrb[0].mxu0
  %v856 = vadd.f32 0.0, %v855
  %v857 = vpop.f32.mrb[0].mxu0
  %v858 = vadd.f32 0.0, %v857
  %v859 = vpop.f32.mrb[0].mxu0
  %v860 = vadd.f32 0.0, %v859
  %v861 = vpop.f32.mrb[0].mxu0
  %v862 = vadd.f32 0.0, %v861
  %863 = vmatprep.mubr.bf16.mxu0 0
  %864 = vmatmul.mubr.bf16.gmra.mrb[0].mxu0 %v680
  %v865 = vpop.f32.mrb[0].mxu0
  %v866 = vadd.f32 0.0, %v865
  %v867 = vpop.f32.mrb[0].mxu0
  %v868 = vadd.f32 0.0, %v867
  %v869 = vpop.f32.mrb[0].mxu0
  %v870 = vadd.f32 0.0, %v869
  %v871 = vpop.f32.mrb[0].mxu0
  %v872 = vadd.f32 0.0, %v871
  %873 = vmatprep.mubr.bf16.mxu0 0
  %874 = vmatmul.mubr.bf16.gmra.mrb[0].mxu0 %v681
  %v875 = vpop.f32.mrb[0].mxu0
  %v876 = vadd.f32 0.0, %v875
  %v877 = vpop.f32.mrb[0].mxu0
  %v878 = vadd.f32 0.0, %v877
  %v879 = vpop.f32.mrb[0].mxu0
  %v880 = vadd.f32 0.0, %v879
  %v881 = vpop.f32.mrb[0].mxu0
  %v882 = vadd.f32 0.0, %v881
  %883 = vmatprep.mubr.bf16.mxu0 0
  %884 = vmatmul.mubr.bf16.gmra.mrb[0].mxu0 %v682
  %v885 = vpop.f32.mrb[0].mxu0
  %v886 = vadd.f32 0.0, %v885
  %v887 = vpop.f32.mrb[0].mxu0
  %v888 = vadd.f32 0.0, %v887
  %v889 = vpop.f32.mrb[0].mxu0
  %v890 = vpop.f32.mrb[0].mxu0
  %891 = vdwg.mxu0
  %892 = vmatprep.subr.bf16.mxu0 0
  %893 = vmatpush1.bf16.msra.mxu0 %v601
  %894 = vmatprep.subr.bf16.mxu0 0
  %895 = vmatpush1.bf16.msra.mxu0 %v606
  %896 = vmatprep.subr.bf16.mxu0 0
  %897 = vmatpush1.bf16.msra.mxu0 %v611
  %898 = vmatprep.subr.bf16.mxu0 0
  %899 = vmatpush1.bf16.msra.mxu0 %v616
  %900 = vmatprep.subr.bf16.mxu0 0
  %901 = vmatpush1.bf16.msra.mxu0 %v621
  %902 = vmatprep.subr.bf16.mxu0 0
  %903 = vmatpush1.bf16.msra.mxu0 %v626
  %904 = vmatprep.subr.bf16.mxu0 0
  %905 = vmatpush1.bf16.msra.mxu0 %v631
  %906 = vmatprep.subr.bf16.mxu0 0
  %907 = vmatpush1.bf16.msra.mxu0 %v636
  %908 = vmatprep.subr.bf16.mxu0 0
  %909 = vmatpush1.bf16.msra.mxu0 0
  %910 = vmatprep.subr.bf16.mxu0 0
  %911 = vmatpush1.bf16.msra.mxu0 0
  %912 = vmatprep.subr.bf16.mxu0 0
  %913 = vmatpush1.bf16.msra.mxu0 0
  %914 = vmatprep.subr.bf16.mxu0 0
  %915 = vmatpush1.bf16.msra.mxu0 0
  %916 = vmatprep.subr.bf16.mxu0 0
  %917 = vmatpush1.bf16.msra.mxu0 0
  %918 = vmatprep.subr.bf16.mxu0 0
  %919 = vmatpush1.bf16.msra.mxu0 0
  %920 = vmatprep.subr.bf16.mxu0 0
  %921 = vmatpush1.bf16.msra.mxu0 0
  %922 = vmatprep.subr.bf16.mxu0 0
  %923 = vmatpush1.bf16.msra.mxu0 0
  %924 = vmatprep.mubr.bf16.mxu0 0
  %925 = vmatmul.mubr.bf16.gmra.mrb[0].mxu0 %v676
  %v926 = vpop.f32.mrb[0].mxu0
  %v927 = vadd.f32 0.0, %v926
  %v928 = vpop.f32.mrb[0].mxu0
  %v929 = vpop.f32.mrb[0].mxu0
  %v930 = vadd.f32 0.0, %v929
  %v931 = vpop.f32.mrb[0].mxu0
  %932 = vmatprep.mubr.bf16.mxu0 0
  %933 = vmatmul.mubr.bf16.gmra.mrb[0].mxu0 %v677
  %v934 = vpop.f32.mrb[0].mxu0
  %v935 = vadd.f32 0.0, %v934
  %v936 = vpop.f32.mrb[0].mxu0
  %v937 = vpop.f32.mrb[0].mxu0
  %v938 = vadd.f32 0.0, %v937
  %v939 = vpop.f32.mrb[0].mxu0
  %940 = vmatprep.mubr.bf16.mxu0 0
  %941 = vmatmul.mubr.bf16.gmra.mrb[0].mxu0 %v678
  %v942 = vpop.f32.mrb[0].mxu0
  %v943 = vadd.f32 0.0, %v942
  %v944 = vpop.f32.mrb[0].mxu0
  %v945 = vpop.f32.mrb[0].mxu0
  %v946 = vadd.f32 0.0, %v945
  %v947 = vpop.f32.mrb[0].mxu0
  %948 = vmatprep.mubr.bf16.mxu0 0
  %949 = vmatmul.mubr.bf16.gmra.mrb[0].mxu0 %v679
  %v950 = vpop.f32.mrb[0].mxu0
  %v951 = vadd.f32 0.0, %v950
  %v952 = vpop.f32.mrb[0].mxu0
  %v953 = vpop.f32.mrb[0].mxu0
  %v954 = vadd.f32 0.0, %v953
  %v955 = vpop.f32.mrb[0].mxu0
  %956 = vmatprep.mubr.bf16.mxu0 0
  %957 = vmatmul.mubr.bf16.gmra.mrb[0].mxu0 %v680
  %v958 = vpop.f32.mrb[0].mxu0
  %v959 = vadd.f32 0.0, %v958
  %v960 = vpop.f32.mrb[0].mxu0
  %v961 = vpop.f32.mrb[0].mxu0
  %v962 = vadd.f32 0.0, %v961
  %v963 = vpop.f32.mrb[0].mxu0
  %964 = vmatprep.mubr.bf16.mxu0 0
  %965 = vmatmul.mubr.bf16.gmra.mrb[0].mxu0 %v681
  %v966 = vpop.f32.mrb[0].mxu0
  %v967 = vadd.f32 0.0, %v966
  %v968 = vpop.f32.mrb[0].mxu0
  %v969 = vpop.f32.mrb[0].mxu0
  %v970 = vadd.f32 0.0, %v969
  %v971 = vpop.f32.mrb[0].mxu0
  %972 = vmatprep.mubr.bf16.mxu0 0
  %973 = vmatmul.mubr.bf16.gmra.mrb[0].mxu0 %v682
  %v974 = vpop.f32.mrb[0].mxu0
  %v975 = vadd.f32 0.0, %v974
  %v976 = vpop.f32.mrb[0].mxu0
  %v977 = vpop.f32.mrb[0].mxu0
  %v978 = vpop.f32.mrb[0].mxu0
  %979 = vdwg.mxu0
  %980 = vst [vmem:[#allocation3] sm:$0xff] %v725
  %981 = vst [vmem:[#allocation3 + $0x8] sm:$0xff] %v727
  %982 = vst [vmem:[#allocation3 + $0x10] sm:$0xff] %v826
  %983 = vst [vmem:[#allocation3 + $0x18] sm:$0xff] %v828
  %984 = vst [vmem:[#allocation3 + $0x20] sm:$0xff] %v927
  %985 = vst [vmem:[#allocation3 + $0x28] sm:$0xff] %v729
  %986 = vst [vmem:[#allocation3 + $0x30] sm:$0xff] %v731
  %987 = vst [vmem:[#allocation3 + $0x38] sm:$0xff] %v830
  %988 = vst [vmem:[#allocation3 + $0x40] sm:$0xff] %v832
  %989 = vst [vmem:[#allocation3 + $0x48] sm:$0xff] %v930
  %990 = vst [vmem:[#allocation3 + $0x50] sm:$0xff] %v735
  %991 = vst [vmem:[#allocation3 + $0x58] sm:$0xff] %v737
  %992 = vst [vmem:[#allocation3 + $0x60] sm:$0xff] %v836
  %993 = vst [vmem:[#allocation3 + $0x68] sm:$0xff] %v838
  %994 = vst [vmem:[#allocation3 + $0x70] sm:$0xff] %v935
  %995 = vst [vmem:[#allocation3 + $0x78] sm:$0xff] %v739
  %996 = vst [vmem:[#allocation3 + $0x80] sm:$0xff] %v741
  %997 = vst [vmem:[#allocation3 + $0x88] sm:$0xff] %v840
  %998 = vst [vmem:[#allocation3 + $0x90] sm:$0xff] %v842
  %999 = vst [vmem:[#allocation3 + $0x98] sm:$0xff] %v938
  %1000 = vst [vmem:[#allocation3 + $0xa0] sm:$0xff] %v745
  %1001 = vst [vmem:[#allocation3 + $0xa8] sm:$0xff] %v747
  %1002 = vst [vmem:[#allocation3 + $0xb0] sm:$0xff] %v846
  %1003 = vst [vmem:[#allocation3 + $0xb8] sm:$0xff] %v848
  %1004 = vst [vmem:[#allocation3 + $0xc0] sm:$0xff] %v943
  %1005 = vst [vmem:[#allocation3 + $0xc8] sm:$0xff] %v749
  %1006 = vst [vmem:[#allocation3 + $0xd0] sm:$0xff] %v751
  %1007 = vst [vmem:[#allocation3 + $0xd8] sm:$0xff] %v850
  %1008 = vst [vmem:[#allocation3 + $0xe0] sm:$0xff] %v852
  %1009 = vst [vmem:[#allocation3 + $0xe8] sm:$0xff] %v946
  %1010 = vst [vmem:[#allocation3 + $0xf0] sm:$0xff] %v755
  %1011 = vst [vmem:[#allocation3 + $0xf8] sm:$0xff] %v757
  %1012 = vst [vmem:[#allocation3 + $0x100] sm:$0xff] %v856
  %1013 = vst [vmem:[#allocation3 + $0x108] sm:$0xff] %v858
  %1014 = vst [vmem:[#allocation3 + $0x110] sm:$0xff] %v951
  %1015 = vst [vmem:[#allocation3 + $0x118] sm:$0xff] %v759
  %1016 = vst [vmem:[#allocation3 + $0x120] sm:$0xff] %v761
  %1017 = vst [vmem:[#allocation3 + $0x128] sm:$0xff] %v860
  %1018 = vst [vmem:[#allocation3 + $0x130] sm:$0xff] %v862
  %1019 = vst [vmem:[#allocation3 + $0x138] sm:$0xff] %v954
  %1020 = vst [vmem:[#allocation3 + $0x140] sm:$0xff] %v765
  %1021 = vst [vmem:[#allocation3 + $0x148] sm:$0xff] %v767
  %1022 = vst [vmem:[#allocation3 + $0x150] sm:$0xff] %v866
  %1023 = vst [vmem:[#allocation3 + $0x158] sm:$0xff] %v868
  %1024 = vst [vmem:[#allocation3 + $0x160] sm:$0xff] %v959
  %1025 = vst [vmem:[#allocation3 + $0x168] sm:$0xff] %v769
  %1026 = vst [vmem:[#allocation3 + $0x170] sm:$0xff] %v771
  %1027 = vst [vmem:[#allocation3 + $0x178] sm:$0xff] %v870
  %1028 = vst [vmem:[#allocation3 + $0x180] sm:$0xff] %v872
  %1029 = vst [vmem:[#allocation3 + $0x188] sm:$0xff] %v962
  %1030 = vst [vmem:[#allocation3 + $0x190] sm:$0xff] %v775
  %1031 = vst [vmem:[#allocation3 + $0x198] sm:$0xff] %v777
  %1032 = vst [vmem:[#allocation3 + $0x1a0] sm:$0xff] %v876
  %1033 = vst [vmem:[#allocation3 + $0x1a8] sm:$0xff] %v878
  %1034 = vst [vmem:[#allocation3 + $0x1b0] sm:$0xff] %v967
  %1035 = vst [vmem:[#allocation3 + $0x1b8] sm:$0xff] %v779
  %1036 = vst [vmem:[#allocation3 + $0x1c0] sm:$0xff] %v781
  %1037 = vst [vmem:[#allocation3 + $0x1c8] sm:$0xff] %v880
  %1038 = vst [vmem:[#allocation3 + $0x1d0] sm:$0xff] %v882
  %1039 = vst [vmem:[#allocation3 + $0x1d8] sm:$0xff] %v970
  %1040 = vst [vmem:[#allocation3 + $0x1e0] sm:$0xff] %v785
  %1041 = vst [vmem:[#allocation3 + $0x1e8] sm:$0xff] %v787
  %1042 = vst [vmem:[#allocation3 + $0x1f0] sm:$0xff] %v886
  %1043 = vst [vmem:[#allocation3 + $0x1f8] sm:$0xff] %v888
  %1044 = vst [vmem:[#allocation3 + $0x200] sm:$0xff] %v975
  %v1045 = vld [vmem:[#allocation3] sm:$0xff]
  %v1046 = vld [vmem:[#allocation3 + $0x8] sm:$0xff]
  %v1047 = vld [vmem:[#allocation3 + $0x10] sm:$0xff]
  %v1048 = vld [vmem:[#allocation3 + $0x18] sm:$0xff]
  %v1049 = vld [vmem:[#allocation3 + $0x28] sm:$0xff]
  %v1050 = vld [vmem:[#allocation3 + $0x30] sm:$0xff]
  %v1051 = vld [vmem:[#allocation3 + $0x38] sm:$0xff]
  %v1052 = vld [vmem:[#allocation3 + $0x40] sm:$0xff]
  %v1053 = vld [vmem:[#allocation3 + $0x48] sm:$0xff]
  %1059 = vrot.lane.b32.xlu0 %v1049, 127
  %v1060 = vpop.permute.xlu0 %1059
  %1061 = vrot.lane.b32.xlu0 %v1050, 127
  %v1062 = vpop.permute.xlu0 %1061
  %1063 = vrot.lane.b32.xlu0 %v1051, 127
  %v1064 = vpop.permute.xlu0 %1063
  %1065 = vrot.lane.b32.xlu0 %v1052, 127
  %v1066 = vpop.permute.xlu0 %1065
  %1067 = vrot.lane.b32.xlu0 %v1053, 127
  %v1068 = vpop.permute.xlu0 %1067
  %vm1069 = vcmask 1039360
  %v1070 = vsel %vm1069, %v1060, %v1062
  %v1071 = vsel %vm1069, %v1062, %v1064
  %v1072 = vsel %vm1069, %v1064, %v1066
  %v1073 = vsel %vm1069, %v1066, %v1068
  %v1078 = vadd.f32 %v1045, %v1070
  %v1079 = vadd.f32 %v1046, %v1071
  %v1080 = vadd.f32 %v1047, %v1072
  %v1081 = vadd.f32 %v1048, %v1073
  %v1082 = vld [vmem:[#allocation3 + $0x50] sm:$0xff]
  %v1083 = vld [vmem:[#allocation3 + $0x58] sm:$0xff]
  %v1084 = vld [vmem:[#allocation3 + $0x60] sm:$0xff]
  %v1085 = vld [vmem:[#allocation3 + $0x68] sm:$0xff]
  %v1086 = vld [vmem:[#allocation3 + $0x70] sm:$0xff]
  %1092 = vrot.lane.b32.xlu0 %v1082, 126
  %v1093 = vpop.permute.xlu0 %1092
  %1094 = vrot.lane.b32.xlu0 %v1083, 126
  %v1095 = vpop.permute.xlu0 %1094
  %1096 = vrot.lane.b32.xlu0 %v1084, 126
  %v1097 = vpop.permute.xlu0 %1096
  %1098 = vrot.lane.b32.xlu0 %v1085, 126
  %v1099 = vpop.permute.xlu0 %1098
  %1100 = vrot.lane.b32.xlu0 %v1086, 126
  %v1101 = vpop.permute.xlu0 %1100
  %vm1102 = vcmask 1031168
  %v1103 = vsel %vm1102, %v1093, %v1095
  %v1104 = vsel %vm1102, %v1095, %v1097
  %v1105 = vsel %vm1102, %v1097, %v1099
  %v1106 = vsel %vm1102, %v1099, %v1101
  %v1111 = vadd.f32 %v1078, %v1103
  %v1112 = vadd.f32 %v1079, %v1104
  %v1113 = vadd.f32 %v1080, %v1105
  %v1114 = vadd.f32 %v1081, %v1106
  %v1115 = vld [vmem:[#allocation3 + $0x78] sm:$0xff]
  %v1116 = vld [vmem:[#allocation3 + $0x80] sm:$0xff]
  %v1117 = vld [vmem:[#allocation3 + $0x88] sm:$0xff]
  %v1118 = vld [vmem:[#allocation3 + $0x90] sm:$0xff]
  %v1119 = vld [vmem:[#allocation3 + $0x98] sm:$0xff]
  %1125 = vrot.lane.b32.xlu0 %v1115, 125
  %v1126 = vpop.permute.xlu0 %1125
  %1127 = vrot.lane.b32.xlu0 %v1116, 125
  %v1128 = vpop.permute.xlu0 %1127
  %1129 = vrot.lane.b32.xlu0 %v1117, 125
  %v1130 = vpop.permute.xlu0 %1129
  %1131 = vrot.lane.b32.xlu0 %v1118, 125
  %v1132 = vpop.permute.xlu0 %1131
  %1133 = vrot.lane.b32.xlu0 %v1119, 125
  %v1134 = vpop.permute.xlu0 %1133
  %vm1135 = vcmask 1022976
  %v1136 = vsel %vm1135, %v1126, %v1128
  %v1137 = vsel %vm1135, %v1128, %v1130
  %v1138 = vsel %vm1135, %v1130, %v1132
  %v1139 = vsel %vm1135, %v1132, %v1134
  %v1144 = vadd.f32 %v1111, %v1136
  %v1145 = vadd.f32 %v1112, %v1137
  %v1146 = vadd.f32 %v1113, %v1138
  %v1147 = vadd.f32 %v1114, %v1139
  %v1148 = vld [vmem:[#allocation3 + $0xa0] sm:$0xff]
  %v1149 = vld [vmem:[#allocation3 + $0xa8] sm:$0xff]
  %v1150 = vld [vmem:[#allocation3 + $0xb0] sm:$0xff]
  %v1151 = vld [vmem:[#allocation3 + $0xb8] sm:$0xff]
  %v1152 = vld [vmem:[#allocation3 + $0xc0] sm:$0xff]
  %1158 = vrot.lane.b32.xlu0 %v1148, 124
  %v1159 = vpop.permute.xlu0 %1158
  %1160 = vrot.lane.b32.xlu0 %v1149, 124
  %v1161 = vpop.permute.xlu0 %1160
  %1162 = vrot.lane.b32.xlu0 %v1150, 124
  %v1163 = vpop.permute.xlu0 %1162
  %1164 = vrot.lane.b32.xlu0 %v1151, 124
  %v1165 = vpop.permute.xlu0 %1164
  %1166 = vrot.lane.b32.xlu0 %v1152, 124
  %v1167 = vpop.permute.xlu0 %1166
  %vm1168 = vcmask 1014784
  %v1169 = vsel %vm1168, %v1159, %v1161
  %v1170 = vsel %vm1168, %v1161, %v1163
  %v1171 = vsel %vm1168, %v1163, %v1165
  %v1172 = vsel %vm1168, %v1165, %v1167
  %v1177 = vadd.f32 %v1144, %v1169
  %v1178 = vadd.f32 %v1145, %v1170
  %v1179 = vadd.f32 %v1146, %v1171
  %v1180 = vadd.f32 %v1147, %v1172
  %v1181 = vld [vmem:[#allocation3 + $0xc8] sm:$0xff]
  %v1182 = vld [vmem:[#allocation3 + $0xd0] sm:$0xff]
  %v1183 = vld [vmem:[#allocation3 + $0xd8] sm:$0xff]
  %v1184 = vld [vmem:[#allocation3 + $0xe0] sm:$0xff]
  %v1185 = vld [vmem:[#allocation3 + $0xe8] sm:$0xff]
  %1191 = vrot.lane.b32.xlu0 %v1181, 123
  %v1192 = vpop.permute.xlu0 %1191
  %1193 = vrot.lane.b32.xlu0 %v1182, 123
  %v1194 = vpop.permute.xlu0 %1193
  %1195 = vrot.lane.b32.xlu0 %v1183, 123
  %v1196 = vpop.permute.xlu0 %1195
  %1197 = vrot.lane.b32.xlu0 %v1184, 123
  %v1198 = vpop.permute.xlu0 %1197
  %1199 = vrot.lane.b32.xlu0 %v1185, 123
  %v1200 = vpop.permute.xlu0 %1199
  %vm1201 = vcmask 1006592
  %v1202 = vsel %vm1201, %v1192, %v1194
  %v1203 = vsel %vm1201, %v1194, %v1196
  %v1204 = vsel %vm1201, %v1196, %v1198
  %v1205 = vsel %vm1201, %v1198, %v1200
  %v1210 = vadd.f32 %v1177, %v1202
  %v1211 = vadd.f32 %v1178, %v1203
  %v1212 = vadd.f32 %v1179, %v1204
  %v1213 = vadd.f32 %v1180, %v1205
  %v1214 = vld [vmem:[#allocation3 + $0xf0] sm:$0xff]
  %v1215 = vld [vmem:[#allocation3 + $0xf8] sm:$0xff]
  %v1216 = vld [vmem:[#allocation3 + $0x100] sm:$0xff]
  %v1217 = vld [vmem:[#allocation3 + $0x108] sm:$0xff]
  %v1218 = vld [vmem:[#allocation3 + $0x110] sm:$0xff]
  %1224 = vrot.lane.b32.xlu0 %v1214, 122
  %v1225 = vpop.permute.xlu0 %1224
  %1226 = vrot.lane.b32.xlu0 %v1215, 122
  %v1227 = vpop.permute.xlu0 %1226
  %1228 = vrot.lane.b32.xlu0 %v1216, 122
  %v1229 = vpop.permute.xlu0 %1228
  %1230 = vrot.lane.b32.xlu0 %v1217, 122
  %v1231 = vpop.permute.xlu0 %1230
  %1232 = vrot.lane.b32.xlu0 %v1218, 122
  %v1233 = vpop.permute.xlu0 %1232
  %vm1234 = vcmask 998400
  %v1235 = vsel %vm1234, %v1225, %v1227
  %v1236 = vsel %vm1234, %v1227, %v1229
  %v1237 = vsel %vm1234, %v1229, %v1231
  %v1238 = vsel %vm1234, %v1231, %v1233
  %v1243 = vadd.f32 %v1210, %v1235
  %v1244 = vadd.f32 %v1211, %v1236
  %v1245 = vadd.f32 %v1212, %v1237
  %v1246 = vadd.f32 %v1213, %v1238
  %v1247 = vld [vmem:[#allocation3 + $0x118] sm:$0xff]
  %v1248 = vld [vmem:[#allocation3 + $0x120] sm:$0xff]
  %v1249 = vld [vmem:[#allocation3 + $0x128] sm:$0xff]
  %v1250 = vld [vmem:[#allocation3 + $0x130] sm:$0xff]
  %v1251 = vld [vmem:[#allocation3 + $0x138] sm:$0xff]
  %1257 = vrot.lane.b32.xlu0 %v1247, 121
  %v1258 = vpop.permute.xlu0 %1257
  %1259 = vrot.lane.b32.xlu0 %v1248, 121
  %v1260 = vpop.permute.xlu0 %1259
  %1261 = vrot.lane.b32.xlu0 %v1249, 121
  %v1262 = vpop.permute.xlu0 %1261
  %1263 = vrot.lane.b32.xlu0 %v1250, 121
  %v1264 = vpop.permute.xlu0 %1263
  %1265 = vrot.lane.b32.xlu0 %v1251, 121
  %v1266 = vpop.permute.xlu0 %1265
  %vm1267 = vcmask 990208
  %v1268 = vsel %vm1267, %v1258, %v1260
  %v1269 = vsel %vm1267, %v1260, %v1262
  %v1270 = vsel %vm1267, %v1262, %v1264
  %v1271 = vsel %vm1267, %v1264, %v1266
  %v1276 = vadd.f32 %v1243, %v1268
  %v1277 = vadd.f32 %v1244, %v1269
  %v1278 = vadd.f32 %v1245, %v1270
  %v1279 = vadd.f32 %v1246, %v1271
  %v1280 = vld [vmem:[#allocation3 + $0x140] sm:$0xff]
  %v1281 = vld [vmem:[#allocation3 + $0x148] sm:$0xff]
  %v1282 = vld [vmem:[#allocation3 + $0x150] sm:$0xff]
  %v1283 = vld [vmem:[#allocation3 + $0x158] sm:$0xff]
  %v1284 = vld [vmem:[#allocation3 + $0x160] sm:$0xff]
  %1290 = vrot.lane.b32.xlu0 %v1280, 120
  %v1291 = vpop.permute.xlu0 %1290
  %1292 = vrot.lane.b32.xlu0 %v1281, 120
  %v1293 = vpop.permute.xlu0 %1292
  %1294 = vrot.lane.b32.xlu0 %v1282, 120
  %v1295 = vpop.permute.xlu0 %1294
  %1296 = vrot.lane.b32.xlu0 %v1283, 120
  %v1297 = vpop.permute.xlu0 %1296
  %1298 = vrot.lane.b32.xlu0 %v1284, 120
  %v1299 = vpop.permute.xlu0 %1298
  %vm1300 = vcmask 982016
  %v1301 = vsel %vm1300, %v1291, %v1293
  %v1302 = vsel %vm1300, %v1293, %v1295
  %v1303 = vsel %vm1300, %v1295, %v1297
  %v1304 = vsel %vm1300, %v1297, %v1299
  %v1309 = vadd.f32 %v1276, %v1301
  %v1310 = vadd.f32 %v1277, %v1302
  %v1311 = vadd.f32 %v1278, %v1303
  %v1312 = vadd.f32 %v1279, %v1304
  %v1313 = vld [vmem:[#allocation3 + $0x168] sm:$0xff]
  %v1314 = vld [vmem:[#allocation3 + $0x170] sm:$0xff]
  %v1315 = vld [vmem:[#allocation3 + $0x178] sm:$0xff]
  %v1316 = vld [vmem:[#allocation3 + $0x180] sm:$0xff]
  %v1317 = vld [vmem:[#allocation3 + $0x188] sm:$0xff]
  %1323 = vrot.lane.b32.xlu0 %v1313, 119
  %v1324 = vpop.permute.xlu0 %1323
  %1325 = vrot.lane.b32.xlu0 %v1314, 119
  %v1326 = vpop.permute.xlu0 %1325
  %1327 = vrot.lane.b32.xlu0 %v1315, 119
  %v1328 = vpop.permute.xlu0 %1327
  %1329 = vrot.lane.b32.xlu0 %v1316, 119
  %v1330 = vpop.permute.xlu0 %1329
  %1331 = vrot.lane.b32.xlu0 %v1317, 119
  %v1332 = vpop.permute.xlu0 %1331
  %vm1333 = vcmask 973824
  %v1334 = vsel %vm1333, %v1324, %v1326
  %v1335 = vsel %vm1333, %v1326, %v1328
  %v1336 = vsel %vm1333, %v1328, %v1330
  %v1337 = vsel %vm1333, %v1330, %v1332
  %v1342 = vadd.f32 %v1309, %v1334
  %v1343 = vadd.f32 %v1310, %v1335
  %v1344 = vadd.f32 %v1311, %v1336
  %v1345 = vadd.f32 %v1312, %v1337
  %v1346 = vld [vmem:[#allocation3 + $0x190] sm:$0xff]
  %v1347 = vld [vmem:[#allocation3 + $0x198] sm:$0xff]
  %v1348 = vld [vmem:[#allocation3 + $0x1a0] sm:$0xff]
  %v1349 = vld [vmem:[#allocation3 + $0x1a8] sm:$0xff]
  %v1350 = vld [vmem:[#allocation3 + $0x1b0] sm:$0xff]
  %1356 = vrot.lane.b32.xlu0 %v1346, 118
  %v1357 = vpop.permute.xlu0 %1356
  %1358 = vrot.lane.b32.xlu0 %v1347, 118
  %v1359 = vpop.permute.xlu0 %1358
  %1360 = vrot.lane.b32.xlu0 %v1348, 118
  %v1361 = vpop.permute.xlu0 %1360
  %1362 = vrot.lane.b32.xlu0 %v1349, 118
  %v1363 = vpop.permute.xlu0 %1362
  %1364 = vrot.lane.b32.xlu0 %v1350, 118
  %v1365 = vpop.permute.xlu0 %1364
  %vm1366 = vcmask 965632
  %v1367 = vsel %vm1366, %v1357, %v1359
  %v1368 = vsel %vm1366, %v1359, %v1361
  %v1369 = vsel %vm1366, %v1361, %v1363
  %v1370 = vsel %vm1366, %v1363, %v1365
  %v1375 = vadd.f32 %v1342, %v1367
  %v1376 = vadd.f32 %v1343, %v1368
  %v1377 = vadd.f32 %v1344, %v1369
  %v1378 = vadd.f32 %v1345, %v1370
  %v1379 = vld [vmem:[#allocation3 + $0x1b8] sm:$0xff]
  %v1380 = vld [vmem:[#allocation3 + $0x1c0] sm:$0xff]
  %v1381 = vld [vmem:[#allocation3 + $0x1c8] sm:$0xff]
  %v1382 = vld [vmem:[#allocation3 + $0x1d0] sm:$0xff]
  %v1383 = vld [vmem:[#allocation3 + $0x1d8] sm:$0xff]
  %1389 = vrot.lane.b32.xlu0 %v1379, 117
  %v1390 = vpop.permute.xlu0 %1389
  %1391 = vrot.lane.b32.xlu0 %v1380, 117
  %v1392 = vpop.permute.xlu0 %1391
  %1393 = vrot.lane.b32.xlu0 %v1381, 117
  %v1394 = vpop.permute.xlu0 %1393
  %1395 = vrot.lane.b32.xlu0 %v1382, 117
  %v1396 = vpop.permute.xlu0 %1395
  %1397 = vrot.lane.b32.xlu0 %v1383, 117
  %v1398 = vpop.permute.xlu0 %1397
  %vm1399 = vcmask 957440
  %v1400 = vsel %vm1399, %v1390, %v1392
  %v1401 = vsel %vm1399, %v1392, %v1394
  %v1402 = vsel %vm1399, %v1394, %v1396
  %v1403 = vsel %vm1399, %v1396, %v1398
  %v1408 = vadd.f32 %v1375, %v1400
  %v1409 = vadd.f32 %v1376, %v1401
  %v1410 = vadd.f32 %v1377, %v1402
  %v1411 = vadd.f32 %v1378, %v1403
  %v1412 = vld [vmem:[#allocation3 + $0x1e0] sm:$0xff]
  %v1413 = vld [vmem:[#allocation3 + $0x1e8] sm:$0xff]
  %v1414 = vld [vmem:[#allocation3 + $0x1f0] sm:$0xff]
  %v1415 = vld [vmem:[#allocation3 + $0x1f8] sm:$0xff]
  %v1416 = vld [vmem:[#allocation3 + $0x200] sm:$0xff]
  %1422 = vrot.lane.b32.xlu0 %v1412, 116
  %v1423 = vpop.permute.xlu0 %1422
  %1424 = vrot.lane.b32.xlu0 %v1413, 116
  %v1425 = vpop.permute.xlu0 %1424
  %1426 = vrot.lane.b32.xlu0 %v1414, 116
  %v1427 = vpop.permute.xlu0 %1426
  %1428 = vrot.lane.b32.xlu0 %v1415, 116
  %v1429 = vpop.permute.xlu0 %1428
  %1430 = vrot.lane.b32.xlu0 %v1416, 116
  %v1431 = vpop.permute.xlu0 %1430
  %v1432 = vsel %vm221, %v1423, %v1425
  %v1433 = vsel %vm221, %v1425, %v1427
  %v1434 = vsel %vm221, %v1427, %v1429
  %v1435 = vsel %vm221, %v1429, %v1431
  %v1440 = vadd.f32 %v1408, %v1432
  %v1441 = vadd.f32 %v1409, %v1433
  %v1442 = vadd.f32 %v1410, %v1434
  %v1443 = vadd.f32 %v1411, %v1435
  %1444 = vst [vmem:[%s2] sm:$0xff] %v1440
  %1445 = vst [vmem:[%s2 + $0x8] sm:$0xff] %v1441
  %1446 = vst [vmem:[%s2 + $0x10] sm:$0xff] %v1442
  %1447 = vst [vmem:[%s2 + $0x18] sm:$0xff] %v1443
  // Predicated region
  $region10: #{forward.1} parent=0 // pred_check
    _
  $region11: #{forward.1} parent=0 // pred_check_branch
    %1449 = sbr.rel (0) target = $region13
  $region12: #{forward.1} parent=0 // pred_region
    _
  $region13: #{forward.1} parent=0 // pred_fallthru
    _
  // Predicated region
  $region14: #{forward.1} parent=0 // pred_check
    _
  $region15: #{forward.1} parent=0 // pred_check_branch
    %1451 = sbr.rel (0) target = $region17
  $region16: #{forward.1} parent=0 // pred_region
    _
  $region17: #{forward.1} parent=0 // pred_fallthru
    _

</llo_original>
